<compile_context>
chip_gen: v6e
topology: v6e:2x2x1
jax: 0.10.0
libtpu: 0.0.40
codegen_flags: <defaults>
</compile_context>

<pallas_src>
import functools
import math

import jax
import jax.numpy as jnp
import numpy as np
from jax.experimental import pallas as pl
from jax.experimental.pallas import tpu as pltpu


# ----------------------------------------------------------------------------
# Pallas kernel: one full bidirectional LSTM layer over the whole sequence.
# ----------------------------------------------------------------------------
def _bilstm_layer_kernel(x_ref, wih_ref, whh_f_ref, whh_b_ref, b_f_ref, b_b_ref,
                         out_ref, xg_ref, *, T, B, H, last_only):
    """
    x_ref   : (T*B, D)   time-major, flattened input sequence (VMEM)
    wih_ref : (D, 8H)    packed input weights: cols [0:4H]=fwd, [4H:8H]=bwd,
                         gate order [i, f, g, o] inside each 4H block (PyTorch order)
    whh_*   : (H, 4H)    recurrent weights per direction (gate-packed)
    b_*     : (1, 4H)    b_ih + b_hh per direction (gate-packed)
    out_ref : (T*B, 2H)  [:, :H]=fwd hidden, [:, H:]=bwd hidden   (intermediate layer)
              (B, 2H)    final-timestep output only               (last layer)
    xg_ref  : (T*B, 8H)  scratch: x @ W_ih for both directions, whole sequence
    """
    # Bulk input projection for all timesteps and both directions: one MXU matmul.
    xg_ref[...] = jnp.dot(x_ref[...], wih_ref[...],
                          preferred_element_type=jnp.float32)

    whh_f = whh_f_ref[...]
    b_f = b_f_ref[...]
    b_b = b_b_ref[...]

    def cell(pre, c_prev):
        i = jax.nn.sigmoid(pre[:, 0 * H:1 * H])
        f = jax.nn.sigmoid(pre[:, 1 * H:2 * H])
        g = jnp.tanh(pre[:, 2 * H:3 * H])
        o = jax.nn.sigmoid(pre[:, 3 * H:4 * H])
        c = f * c_prev + i * g
        h = o * jnp.tanh(c)
        return h, c

    zeros = jnp.zeros((B, H), jnp.float32)
    unroll = True if T <= 16 else 4  # full unroll only for short sequences

    # ---------------- forward direction ----------------
    def fwd_step(t, carry):
        h, c = carry
        pre = (xg_ref[pl.ds(t * B, B), 0:4 * H]
               + jnp.dot(h, whh_f, preferred_element_type=jnp.float32)
               + b_f)
        h, c = cell(pre, c)
        if not last_only:
            out_ref[pl.ds(t * B, B), 0:H] = h.astype(out_ref.dtype)
        return (h, c)

    h_f, _ = jax.lax.fori_loop(0, T, fwd_step, (zeros, zeros), unroll=unroll)

    # ---------------- backward direction ----------------
    if last_only:
        # The module only reads out[:, T-1, :]. The backward hidden at t=T-1 is
        # the result of a single step over x[T-1] from zero state, so the
        # h @ W_hh term is exactly zero and the whole backward recurrence folds
        # into one cell evaluation.
        pre_b = xg_ref[pl.ds((T - 1) * B, B), 4 * H:8 * H] + b_b
        h_b, _ = cell(pre_b, zeros)
        out_ref[:, 0:H] = h_f.astype(out_ref.dtype)
        out_ref[:, H:2 * H] = h_b.astype(out_ref.dtype)
    else:
        whh_b = whh_b_ref[...]

        def bwd_step(s, carry):
            h, c = carry
            t = T - 1 - s
            pre = (xg_ref[pl.ds(t * B, B), 4 * H:8 * H]
                   + jnp.dot(h, whh_b, preferred_element_type=jnp.float32)
                   + b_b)
            h, c = cell(pre, c)
            out_ref[pl.ds(t * B, B), H:2 * H] = h.astype(out_ref.dtype)
            return (h, c)

        jax.lax.fori_loop(0, T, bwd_step, (zeros, zeros), unroll=unroll)


def _bilstm_layer_call(x_flat, wih, whh_f, whh_b, b_f, b_b, *, T, B, last_only):
    """x_flat: (T*B, D_in) -> (T*B, 2H) or (B, 2H) for the last layer."""
    H = whh_f.shape[0]
    rows = B if last_only else T * B
    kern = functools.partial(_bilstm_layer_kernel, T=T, B=B, H=H,
                             last_only=last_only)
    vmem = pl.BlockSpec(memory_space=pltpu.MemorySpace.VMEM)
    return pl.pallas_call(
        kern,
        out_shape=jax.ShapeDtypeStruct((rows, 2 * H), jnp.float32),
        in_specs=[vmem, vmem, vmem, vmem, vmem, vmem],
        out_specs=vmem,
        scratch_shapes=[pltpu.VMEM((T * B, 8 * H), jnp.float32)],
    )(x_flat, wih, whh_f, whh_b, b_f, b_b)


# ----------------------------------------------------------------------------
# BiLSTMLayer forward: one transpose up front, then one fused kernel per layer.
# ----------------------------------------------------------------------------
def bilstm_layer_forward(x, kernel_params):
    """x: (B, T, D_in) -> (B, 2*hid_dim), mirroring BiLSTMLayer.forward (eval)."""
    B, T, D = x.shape
    a = jnp.transpose(x, (1, 0, 2)).reshape(T * B, D)   # time-major, flattened; once
    n = len(kernel_params)
    for li, (wih, whh_f, whh_b, b_f, b_b) in enumerate(kernel_params):
        a = _bilstm_layer_call(a, wih, whh_f, whh_b, b_f, b_b,
                               T=T, B=B, last_only=(li == n - 1))
        # TODO(synk): inter-layer dropout is training-mode only; nn.LSTM eval
        # semantics are identity, which is what we compute.
    return a                                            # (B, 2*hid_dim)


# ----------------------------------------------------------------------------
# Deterministic parameter init (PyTorch nn.LSTM layout & init range)
# ----------------------------------------------------------------------------
def init_raw_params(key, in_dim, hid_dim, n_layers):
    bound = 1.0 / math.sqrt(hid_dim)
    layers = []
    for layer in range(n_layers):
        d_in = in_dim if layer == 0 else 2 * hid_dim
        dirs = []
        for _ in range(2):  # forward, backward
            key, k1, k2, k3, k4 = jax.random.split(key, 5)
            w_ih = jax.random.uniform(k1, (4 * hid_dim, d_in), jnp.float32, -bound, bound)
            w_hh = jax.random.uniform(k2, (4 * hid_dim, hid_dim), jnp.float32, -bound, bound)
            b_ih = jax.random.uniform(k3, (4 * hid_dim,), jnp.float32, -bound, bound)
            b_hh = jax.random.uniform(k4, (4 * hid_dim,), jnp.float32, -bound, bound)
            dirs.append((w_ih, w_hh, b_ih, b_hh))
        layers.append(dirs)
    return layers


def to_kernel_params(raw_params):
    """Pack PyTorch-layout weights into the gate-packed kernel layout."""
    kernel_params = []
    for (fwd, bwd) in raw_params:
        w_ih_f, w_hh_f, b_ih_f, b_hh_f = fwd
        w_ih_b, w_hh_b, b_ih_b, b_hh_b = bwd
        # (4H, D).T -> (D, 4H): columns ordered [i, f, g, o]; both dirs side-by-side.
        wih = jnp.concatenate([w_ih_f.T, w_ih_b.T], axis=1)   # (D_in, 8H)
        whh_f = w_hh_f.T                                      # (H, 4H)
        whh_b = w_hh_b.T                                      # (H, 4H)
        b_f = (b_ih_f + b_hh_f).reshape(1, -1)                # (1, 4H)
        b_b = (b_ih_b + b_hh_b).reshape(1, -1)                # (1, 4H)
        kernel_params.append((wih, whh_f, whh_b, b_f, b_b))
    return kernel_params


# ----------------------------------------------------------------------------
# Pure-JAX reference (PyTorch LSTM equations) for correctness check
# ----------------------------------------------------------------------------
def _ref_lstm_dir(x_seq, w_ih, w_hh, b_ih, b_hh):
    H = w_hh.shape[1]
    B = x_seq.shape[1]

    def step(carry, x_t):
        h, c = carry
        gates = x_t @ w_ih.T + h @ w_hh.T + b_ih + b_hh
        i = jax.nn.sigmoid(gates[:, 0:H])
        f = jax.nn.sigmoid(gates[:, H:2 * H])
        g = jnp.tanh(gates[:, 2 * H:3 * H])
        o = jax.nn.sigmoid(gates[:, 3 * H:4 * H])
        c = f * c + i * g
        h = o * jnp.tanh(c)
        return (h, c), h

    init = (jnp.zeros((B, H), jnp.float32), jnp.zeros((B, H), jnp.float32))
    _, hs = jax.lax.scan(step, init, x_seq)
    return hs


def bilstm_layer_ref(x, raw_params):
    inp = x
    for (fwd, bwd) in raw_params:
        xs = jnp.transpose(inp, (1, 0, 2))
        out_f = _ref_lstm_dir(xs, *fwd)
        out_b = _ref_lstm_dir(xs[::-1], *bwd)[::-1]
        inp = jnp.transpose(jnp.concatenate([out_f, out_b], axis=-1), (1, 0, 2))
    return inp[:, -1, :]


# ----------------------------------------------------------------------------
if __name__ == "__main__":
    # BiLSTMLayer(in_dim=16, hid_dim=32, n_layers=2, dropout=0.1) at small shapes.
    B, T, IN_DIM, HID_DIM, N_LAYERS = 4, 8, 16, 32, 2

    key = jax.random.PRNGKey(0)
    kx, kp = jax.random.split(key)
    x = jax.random.normal(kx, (B, T, IN_DIM), jnp.float32)

    raw_params = init_raw_params(kp, IN_DIM, HID_DIM, N_LAYERS)
    kernel_params = to_kernel_params(raw_params)

    out = jax.block_until_ready(bilstm_layer_forward(x, kernel_params))
    assert out.shape == (B, 2 * HID_DIM), out.shape

    ref = jax.block_until_ready(bilstm_layer_ref(x, raw_params))
    np.testing.assert_allclose(np.asarray(out), np.asarray(ref), rtol=1e-5, atol=1e-5)

    print("KERNEL_OK")
</pallas_src>

<mosaic_0001>
module attributes {stable_mosaic.version = 11 : i64} {
  func.func @_bilstm_layer_kernel(%arg0: memref<32x16xf32, #tpu.memory_space<vmem>>, %arg1: memref<16x256xf32, #tpu.memory_space<vmem>>, %arg2: memref<32x128xf32, #tpu.memory_space<vmem>>, %arg3: memref<32x128xf32, #tpu.memory_space<vmem>>, %arg4: memref<1x128xf32, #tpu.memory_space<vmem>>, %arg5: memref<1x128xf32, #tpu.memory_space<vmem>>, %arg6: memref<32x64xf32, #tpu.memory_space<vmem>>, %arg7: memref<32x256xf32, #tpu.memory_space<vmem>>) attributes {dimension_semantics = [], scalar_prefetch = 0 : i64, scratch_operands = 1 : i64, tpu.core_type = #tpu.core_type<tc>} {
    %c0 = arith.constant 0 : index
    %c0_0 = arith.constant 0 : index
    %0 = vector.load %arg0[%c0, %c0_0] : memref<32x16xf32, #tpu.memory_space<vmem>>, vector<32x16xf32>
    %c0_1 = arith.constant 0 : index
    %c0_2 = arith.constant 0 : index
    %1 = vector.load %arg1[%c0_1, %c0_2] : memref<16x256xf32, #tpu.memory_space<vmem>>, vector<16x256xf32>
    %cst = arith.constant dense<0.000000e+00> : vector<32x256xf32>
    %2 = tpu.matmul %0, %1, %cst {dimension_numbers = #tpu.dot_dimension_numbers<[1], [0], [0], [1], [0, 0, 1, 1], [], []>} : vector<32x16xf32>, vector<16x256xf32>, vector<32x256xf32> -> vector<32x256xf32>
    %c0_3 = arith.constant 0 : index
    %c0_4 = arith.constant 0 : index
    %3 = vector.load %arg7[%c0_3, %c0_4] : memref<32x256xf32, #tpu.memory_space<vmem>>, vector<32x256xf32>
    tpu.vector_store %arg7[%c0_3, %c0_4], %2 {strides = array<i32>} : memref<32x256xf32, #tpu.memory_space<vmem>>, vector<32x256xf32>,
    %c0_5 = arith.constant 0 : index
    %c0_6 = arith.constant 0 : index
    %4 = vector.load %arg2[%c0_5, %c0_6] : memref<32x128xf32, #tpu.memory_space<vmem>>, vector<32x128xf32>
    %c0_7 = arith.constant 0 : index
    %c0_8 = arith.constant 0 : index
    %5 = vector.load %arg4[%c0_7, %c0_8] : memref<1x128xf32, #tpu.memory_space<vmem>>, vector<1x128xf32>
    %c0_9 = arith.constant 0 : index
    %c0_10 = arith.constant 0 : index
    %6 = vector.load %arg5[%c0_9, %c0_10] : memref<1x128xf32, #tpu.memory_space<vmem>>, vector<1x128xf32>
    %cst_11 = arith.constant 0.000000e+00 : f32
    %7 = vector.broadcast %cst_11 : f32 to vector<4x32xf32>
    %c0_i32 = arith.constant 0 : i32
    %c4_i32 = arith.constant 4 : i32
    %8 = arith.muli %c0_i32, %c4_i32 : i32
    %9 = arith.index_cast %8 : i32 to index
    %c0_12 = arith.constant 0 : index
    %10 = vector.load %arg7[%9, %c0_12] : memref<32x256xf32, #tpu.memory_space<vmem>>, vector<4x128xf32>
    %cst_13 = arith.constant dense<0.000000e+00> : vector<4x128xf32>
    %11 = tpu.matmul %7, %4, %cst_13 {dimension_numbers = #tpu.dot_dimension_numbers<[1], [0], [0], [1], [0, 0, 1, 1], [], []>} : vector<4x32xf32>, vector<32x128xf32>, vector<4x128xf32> -> vector<4x128xf32>
    %12 = arith.addf %10, %11 : vector<4x128xf32>
    %13 = vector.broadcast %5 : vector<1x128xf32> to vector<4x128xf32>
    %14 = arith.addf %12, %13 : vector<4x128xf32>
    %15 = vector.extract_strided_slice %14 {offsets = [0, 0], sizes = [4, 32], strides = [1, 1]} : vector<4x128xf32> to vector<4x32xf32>
    %16 = arith.negf %15 : vector<4x32xf32>
    %17 = math.exp %16 : vector<4x32xf32>
    %cst_14 = arith.constant 1.000000e+00 : f32
    %18 = vector.broadcast %cst_14 : f32 to vector<4x32xf32>
    %19 = arith.addf %18, %17 : vector<4x32xf32>
    %20 = arith.divf %18, %19 : vector<4x32xf32>
    %21 = vector.extract_strided_slice %14 {offsets = [0, 32], sizes = [4, 32], strides = [1, 1]} : vector<4x128xf32> to vector<4x32xf32>
    %22 = arith.negf %21 : vector<4x32xf32>
    %23 = math.exp %22 : vector<4x32xf32>
    %cst_15 = arith.constant 1.000000e+00 : f32
    %24 = vector.broadcast %cst_15 : f32 to vector<4x32xf32>
    %25 = arith.addf %24, %23 : vector<4x32xf32>
    %26 = arith.divf %24, %25 : vector<4x32xf32>
    %27 = vector.extract_strided_slice %14 {offsets = [0, 64], sizes = [4, 32], strides = [1, 1]} : vector<4x128xf32> to vector<4x32xf32>
    %28 = math.tanh %27 : vector<4x32xf32>
    %29 = vector.extract_strided_slice %14 {offsets = [0, 96], sizes = [4, 32], strides = [1, 1]} : vector<4x128xf32> to vector<4x32xf32>
    %30 = arith.negf %29 : vector<4x32xf32>
    %31 = math.exp %30 : vector<4x32xf32>
    %cst_16 = arith.constant 1.000000e+00 : f32
    %32 = vector.broadcast %cst_16 : f32 to vector<4x32xf32>
    %33 = arith.addf %32, %31 : vector<4x32xf32>
    %34 = arith.divf %32, %33 : vector<4x32xf32>
    %35 = arith.mulf %26, %7 : vector<4x32xf32>
    %36 = arith.mulf %20, %28 : vector<4x32xf32>
    %37 = arith.addf %35, %36 : vector<4x32xf32>
    %38 = math.tanh %37 : vector<4x32xf32>
    %39 = arith.mulf %34, %38 : vector<4x32xf32>
    %c4_i32_17 = arith.constant 4 : i32
    %40 = arith.muli %c0_i32, %c4_i32_17 : i32
    %41 = arith.index_cast %40 : i32 to index
    %c0_18 = arith.constant 0 : index
    %42 = vector.load %arg6[%41, %c0_18] : memref<32x64xf32, #tpu.memory_space<vmem>>, vector<4x32xf32>
    tpu.vector_store %arg6[%41, %c0_18], %39 {strides = array<i32>} : memref<32x64xf32, #tpu.memory_space<vmem>>, vector<4x32xf32>,
    %c1_i32 = arith.constant 1 : i32
    %c4_i32_19 = arith.constant 4 : i32
    %43 = arith.muli %c1_i32, %c4_i32_19 : i32
    %44 = arith.index_cast %43 : i32 to index
    %c0_20 = arith.constant 0 : index
    %45 = vector.load %arg7[%44, %c0_20] : memref<32x256xf32, #tpu.memory_space<vmem>>, vector<4x128xf32>
    %cst_21 = arith.constant dense<0.000000e+00> : vector<4x128xf32>
    %46 = tpu.matmul %39, %4, %cst_21 {dimension_numbers = #tpu.dot_dimension_numbers<[1], [0], [0], [1], [0, 0, 1, 1], [], []>} : vector<4x32xf32>, vector<32x128xf32>, vector<4x128xf32> -> vector<4x128xf32>
    %47 = arith.addf %45, %46 : vector<4x128xf32>
    %48 = vector.broadcast %5 : vector<1x128xf32> to vector<4x128xf32>
    %49 = arith.addf %47, %48 : vector<4x128xf32>
    %50 = vector.extract_strided_slice %49 {offsets = [0, 0], sizes = [4, 32], strides = [1, 1]} : vector<4x128xf32> to vector<4x32xf32>
    %51 = arith.negf %50 : vector<4x32xf32>
    %52 = math.exp %51 : vector<4x32xf32>
    %cst_22 = arith.constant 1.000000e+00 : f32
    %53 = vector.broadcast %cst_22 : f32 to vector<4x32xf32>
    %54 = arith.addf %53, %52 : vector<4x32xf32>
    %55 = arith.divf %53, %54 : vector<4x32xf32>
    %56 = vector.extract_strided_slice %49 {offsets = [0, 32], sizes = [4, 32], strides = [1, 1]} : vector<4x128xf32> to vector<4x32xf32>
    %57 = arith.negf %56 : vector<4x32xf32>
    %58 = math.exp %57 : vector<4x32xf32>
    %cst_23 = arith.constant 1.000000e+00 : f32
    %59 = vector.broadcast %cst_23 : f32 to vector<4x32xf32>
    %60 = arith.addf %59, %58 : vector<4x32xf32>
    %61 = arith.divf %59, %60 : vector<4x32xf32>
    %62 = vector.extract_strided_slice %49 {offsets = [0, 64], sizes = [4, 32], strides = [1, 1]} : vector<4x128xf32> to vector<4x32xf32>
    %63 = math.tanh %62 : vector<4x32xf32>
    %64 = vector.extract_strided_slice %49 {offsets = [0, 96], sizes = [4, 32], strides = [1, 1]} : vector<4x128xf32> to vector<4x32xf32>
    %65 = arith.negf %64 : vector<4x32xf32>
    %66 = math.exp %65 : vector<4x32xf32>
    %cst_24 = arith.constant 1.000000e+00 : f32
    %67 = vector.broadcast %cst_24 : f32 to vector<4x32xf32>
    %68 = arith.addf %67, %66 : vector<4x32xf32>
    %69 = arith.divf %67, %68 : vector<4x32xf32>
    %70 = arith.mulf %61, %37 : vector<4x32xf32>
    %71 = arith.mulf %55, %63 : vector<4x32xf32>
    %72 = arith.addf %70, %71 : vector<4x32xf32>
    %73 = math.tanh %72 : vector<4x32xf32>
    %74 = arith.mulf %69, %73 : vector<4x32xf32>
    %c4_i32_25 = arith.constant 4 : i32
    %75 = arith.muli %c1_i32, %c4_i32_25 : i32
    %76 = arith.index_cast %75 : i32 to index
    %c0_26 = arith.constant 0 : index
    %77 = vector.load %arg6[%76, %c0_26] : memref<32x64xf32, #tpu.memory_space<vmem>>, vector<4x32xf32>
    tpu.vector_store %arg6[%76, %c0_26], %74 {strides = array<i32>} : memref<32x64xf32, #tpu.memory_space<vmem>>, vector<4x32xf32>,
    %c2_i32 = arith.constant 2 : i32
    %c4_i32_27 = arith.constant 4 : i32
    %78 = arith.muli %c2_i32, %c4_i32_27 : i32
    %79 = arith.index_cast %78 : i32 to index
    %c0_28 = arith.constant 0 : index
    %80 = vector.load %arg7[%79, %c0_28] : memref<32x256xf32, #tpu.memory_space<vmem>>, vector<4x128xf32>
    %cst_29 = arith.constant dense<0.000000e+00> : vector<4x128xf32>
    %81 = tpu.matmul %74, %4, %cst_29 {dimension_numbers = #tpu.dot_dimension_numbers<[1], [0], [0], [1], [0, 0, 1, 1], [], []>} : vector<4x32xf32>, vector<32x128xf32>, vector<4x128xf32> -> vector<4x128xf32>
    %82 = arith.addf %80, %81 : vector<4x128xf32>
    %83 = vector.broadcast %5 : vector<1x128xf32> to vector<4x128xf32>
    %84 = arith.addf %82, %83 : vector<4x128xf32>
    %85 = vector.extract_strided_slice %84 {offsets = [0, 0], sizes = [4, 32], strides = [1, 1]} : vector<4x128xf32> to vector<4x32xf32>
    %86 = arith.negf %85 : vector<4x32xf32>
    %87 = math.exp %86 : vector<4x32xf32>
    %cst_30 = arith.constant 1.000000e+00 : f32
    %88 = vector.broadcast %cst_30 : f32 to vector<4x32xf32>
    %89 = arith.addf %88, %87 : vector<4x32xf32>
    %90 = arith.divf %88, %89 : vector<4x32xf32>
    %91 = vector.extract_strided_slice %84 {offsets = [0, 32], sizes = [4, 32], strides = [1, 1]} : vector<4x128xf32> to vector<4x32xf32>
    %92 = arith.negf %91 : vector<4x32xf32>
    %93 = math.exp %92 : vector<4x32xf32>
    %cst_31 = arith.constant 1.000000e+00 : f32
    %94 = vector.broadcast %cst_31 : f32 to vector<4x32xf32>
    %95 = arith.addf %94, %93 : vector<4x32xf32>
    %96 = arith.divf %94, %95 : vector<4x32xf32>
    %97 = vector.extract_strided_slice %84 {offsets = [0, 64], sizes = [4, 32], strides = [1, 1]} : vector<4x128xf32> to vector<4x32xf32>
    %98 = math.tanh %97 : vector<4x32xf32>
    %99 = vector.extract_strided_slice %84 {offsets = [0, 96], sizes = [4, 32], strides = [1, 1]} : vector<4x128xf32> to vector<4x32xf32>
    %100 = arith.negf %99 : vector<4x32xf32>
    %101 = math.exp %100 : vector<4x32xf32>
    %cst_32 = arith.constant 1.000000e+00 : f32
    %102 = vector.broadcast %cst_32 : f32 to vector<4x32xf32>
    %103 = arith.addf %102, %101 : vector<4x32xf32>
    %104 = arith.divf %102, %103 : vector<4x32xf32>
    %105 = arith.mulf %96, %72 : vector<4x32xf32>
    %106 = arith.mulf %90, %98 : vector<4x32xf32>
    %107 = arith.addf %105, %106 : vector<4x32xf32>
    %108 = math.tanh %107 : vector<4x32xf32>
    %109 = arith.mulf %104, %108 : vector<4x32xf32>
    %c4_i32_33 = arith.constant 4 : i32
    %110 = arith.muli %c2_i32, %c4_i32_33 : i32
    %111 = arith.index_cast %110 : i32 to index
    %c0_34 = arith.constant 0 : index
    %112 = vector.load %arg6[%111, %c0_34] : memref<32x64xf32, #tpu.memory_space<vmem>>, vector<4x32xf32>
    tpu.vector_store %arg6[%111, %c0_34], %109 {strides = array<i32>} : memref<32x64xf32, #tpu.memory_space<vmem>>, vector<4x32xf32>,
    %c3_i32 = arith.constant 3 : i32
    %c4_i32_35 = arith.constant 4 : i32
    %113 = arith.muli %c3_i32, %c4_i32_35 : i32
    %114 = arith.index_cast %113 : i32 to index
    %c0_36 = arith.constant 0 : index
    %115 = vector.load %arg7[%114, %c0_36] : memref<32x256xf32, #tpu.memory_space<vmem>>, vector<4x128xf32>
    %cst_37 = arith.constant dense<0.000000e+00> : vector<4x128xf32>
    %116 = tpu.matmul %109, %4, %cst_37 {dimension_numbers = #tpu.dot_dimension_numbers<[1], [0], [0], [1], [0, 0, 1, 1], [], []>} : vector<4x32xf32>, vector<32x128xf32>, vector<4x128xf32> -> vector<4x128xf32>
    %117 = arith.addf %115, %116 : vector<4x128xf32>
    %118 = vector.broadcast %5 : vector<1x128xf32> to vector<4x128xf32>
    %119 = arith.addf %117, %118 : vector<4x128xf32>
    %120 = vector.extract_strided_slice %119 {offsets = [0, 0], sizes = [4, 32], strides = [1, 1]} : vector<4x128xf32> to vector<4x32xf32>
    %121 = arith.negf %120 : vector<4x32xf32>
    %122 = math.exp %121 : vector<4x32xf32>
    %cst_38 = arith.constant 1.000000e+00 : f32
    %123 = vector.broadcast %cst_38 : f32 to vector<4x32xf32>
    %124 = arith.addf %123, %122 : vector<4x32xf32>
    %125 = arith.divf %123, %124 : vector<4x32xf32>
    %126 = vector.extract_strided_slice %119 {offsets = [0, 32], sizes = [4, 32], strides = [1, 1]} : vector<4x128xf32> to vector<4x32xf32>
    %127 = arith.negf %126 : vector<4x32xf32>
    %128 = math.exp %127 : vector<4x32xf32>
    %cst_39 = arith.constant 1.000000e+00 : f32
    %129 = vector.broadcast %cst_39 : f32 to vector<4x32xf32>
    %130 = arith.addf %129, %128 : vector<4x32xf32>
    %131 = arith.divf %129, %130 : vector<4x32xf32>
    %132 = vector.extract_strided_slice %119 {offsets = [0, 64], sizes = [4, 32], strides = [1, 1]} : vector<4x128xf32> to vector<4x32xf32>
    %133 = math.tanh %132 : vector<4x32xf32>
    %134 = vector.extract_strided_slice %119 {offsets = [0, 96], sizes = [4, 32], strides = [1, 1]} : vector<4x128xf32> to vector<4x32xf32>
    %135 = arith.negf %134 : vector<4x32xf32>
    %136 = math.exp %135 : vector<4x32xf32>
    %cst_40 = arith.constant 1.000000e+00 : f32
    %137 = vector.broadcast %cst_40 : f32 to vector<4x32xf32>
    %138 = arith.addf %137, %136 : vector<4x32xf32>
    %139 = arith.divf %137, %138 : vector<4x32xf32>
    %140 = arith.mulf %131, %107 : vector<4x32xf32>
    %141 = arith.mulf %125, %133 : vector<4x32xf32>
    %142 = arith.addf %140, %141 : vector<4x32xf32>
    %143 = math.tanh %142 : vector<4x32xf32>
    %144 = arith.mulf %139, %143 : vector<4x32xf32>
    %c4_i32_41 = arith.constant 4 : i32
    %145 = arith.muli %c3_i32, %c4_i32_41 : i32
    %146 = arith.index_cast %145 : i32 to index
    %c0_42 = arith.constant 0 : index
    %147 = vector.load %arg6[%146, %c0_42] : memref<32x64xf32, #tpu.memory_space<vmem>>, vector<4x32xf32>
    tpu.vector_store %arg6[%146, %c0_42], %144 {strides = array<i32>} : memref<32x64xf32, #tpu.memory_space<vmem>>, vector<4x32xf32>,
    %c4_i32_43 = arith.constant 4 : i32
    %c4_i32_44 = arith.constant 4 : i32
    %148 = arith.muli %c4_i32_43, %c4_i32_44 : i32
    %149 = arith.index_cast %148 : i32 to index
    %c0_45 = arith.constant 0 : index
    %150 = vector.load %arg7[%149, %c0_45] : memref<32x256xf32, #tpu.memory_space<vmem>>, vector<4x128xf32>
    %cst_46 = arith.constant dense<0.000000e+00> : vector<4x128xf32>
    %151 = tpu.matmul %144, %4, %cst_46 {dimension_numbers = #tpu.dot_dimension_numbers<[1], [0], [0], [1], [0, 0, 1, 1], [], []>} : vector<4x32xf32>, vector<32x128xf32>, vector<4x128xf32> -> vector<4x128xf32>
    %152 = arith.addf %150, %151 : vector<4x128xf32>
    %153 = vector.broadcast %5 : vector<1x128xf32> to vector<4x128xf32>
    %154 = arith.addf %152, %153 : vector<4x128xf32>
    %155 = vector.extract_strided_slice %154 {offsets = [0, 0], sizes = [4, 32], strides = [1, 1]} : vector<4x128xf32> to vector<4x32xf32>
    %156 = arith.negf %155 : vector<4x32xf32>
    %157 = math.exp %156 : vector<4x32xf32>
    %cst_47 = arith.constant 1.000000e+00 : f32
    %158 = vector.broadcast %cst_47 : f32 to vector<4x32xf32>
    %159 = arith.addf %158, %157 : vector<4x32xf32>
    %160 = arith.divf %158, %159 : vector<4x32xf32>
    %161 = vector.extract_strided_slice %154 {offsets = [0, 32], sizes = [4, 32], strides = [1, 1]} : vector<4x128xf32> to vector<4x32xf32>
    %162 = arith.negf %161 : vector<4x32xf32>
    %163 = math.exp %162 : vector<4x32xf32>
    %cst_48 = arith.constant 1.000000e+00 : f32
    %164 = vector.broadcast %cst_48 : f32 to vector<4x32xf32>
    %165 = arith.addf %164, %163 : vector<4x32xf32>
    %166 = arith.divf %164, %165 : vector<4x32xf32>
    %167 = vector.extract_strided_slice %154 {offsets = [0, 64], sizes = [4, 32], strides = [1, 1]} : vector<4x128xf32> to vector<4x32xf32>
    %168 = math.tanh %167 : vector<4x32xf32>
    %169 = vector.extract_strided_slice %154 {offsets = [0, 96], sizes = [4, 32], strides = [1, 1]} : vector<4x128xf32> to vector<4x32xf32>
    %170 = arith.negf %169 : vector<4x32xf32>
    %171 = math.exp %170 : vector<4x32xf32>
    %cst_49 = arith.constant 1.000000e+00 : f32
    %172 = vector.broadcast %cst_49 : f32 to vector<4x32xf32>
    %173 = arith.addf %172, %171 : vector<4x32xf32>
    %174 = arith.divf %172, %173 : vector<4x32xf32>
    %175 = arith.mulf %166, %142 : vector<4x32xf32>
    %176 = arith.mulf %160, %168 : vector<4x32xf32>
    %177 = arith.addf %175, %176 : vector<4x32xf32>
    %178 = math.tanh %177 : vector<4x32xf32>
    %179 = arith.mulf %174, %178 : vector<4x32xf32>
    %c4_i32_50 = arith.constant 4 : i32
    %180 = arith.muli %c4_i32_43, %c4_i32_50 : i32
    %181 = arith.index_cast %180 : i32 to index
    %c0_51 = arith.constant 0 : index
    %182 = vector.load %arg6[%181, %c0_51] : memref<32x64xf32, #tpu.memory_space<vmem>>, vector<4x32xf32>
    tpu.vector_store %arg6[%181, %c0_51], %179 {strides = array<i32>} : memref<32x64xf32, #tpu.memory_space<vmem>>, vector<4x32xf32>,
    %c5_i32 = arith.constant 5 : i32
    %c4_i32_52 = arith.constant 4 : i32
    %183 = arith.muli %c5_i32, %c4_i32_52 : i32
    %184 = arith.index_cast %183 : i32 to index
    %c0_53 = arith.constant 0 : index
    %185 = vector.load %arg7[%184, %c0_53] : memref<32x256xf32, #tpu.memory_space<vmem>>, vector<4x128xf32>
    %cst_54 = arith.constant dense<0.000000e+00> : vector<4x128xf32>
    %186 = tpu.matmul %179, %4, %cst_54 {dimension_numbers = #tpu.dot_dimension_numbers<[1], [0], [0], [1], [0, 0, 1, 1], [], []>} : vector<4x32xf32>, vector<32x128xf32>, vector<4x128xf32> -> vector<4x128xf32>
    %187 = arith.addf %185, %186 : vector<4x128xf32>
    %188 = vector.broadcast %5 : vector<1x128xf32> to vector<4x128xf32>
    %189 = arith.addf %187, %188 : vector<4x128xf32>
    %190 = vector.extract_strided_slice %189 {offsets = [0, 0], sizes = [4, 32], strides = [1, 1]} : vector<4x128xf32> to vector<4x32xf32>
    %191 = arith.negf %190 : vector<4x32xf32>
    %192 = math.exp %191 : vector<4x32xf32>
    %cst_55 = arith.constant 1.000000e+00 : f32
    %193 = vector.broadcast %cst_55 : f32 to vector<4x32xf32>
    %194 = arith.addf %193, %192 : vector<4x32xf32>
    %195 = arith.divf %193, %194 : vector<4x32xf32>
    %196 = vector.extract_strided_slice %189 {offsets = [0, 32], sizes = [4, 32], strides = [1, 1]} : vector<4x128xf32> to vector<4x32xf32>
    %197 = arith.negf %196 : vector<4x32xf32>
    %198 = math.exp %197 : vector<4x32xf32>
    %cst_56 = arith.constant 1.000000e+00 : f32
    %199 = vector.broadcast %cst_56 : f32 to vector<4x32xf32>
    %200 = arith.addf %199, %198 : vector<4x32xf32>
    %201 = arith.divf %199, %200 : vector<4x32xf32>
    %202 = vector.extract_strided_slice %189 {offsets = [0, 64], sizes = [4, 32], strides = [1, 1]} : vector<4x128xf32> to vector<4x32xf32>
    %203 = math.tanh %202 : vector<4x32xf32>
    %204 = vector.extract_strided_slice %189 {offsets = [0, 96], sizes = [4, 32], strides = [1, 1]} : vector<4x128xf32> to vector<4x32xf32>
    %205 = arith.negf %204 : vector<4x32xf32>
    %206 = math.exp %205 : vector<4x32xf32>
    %cst_57 = arith.constant 1.000000e+00 : f32
    %207 = vector.broadcast %cst_57 : f32 to vector<4x32xf32>
    %208 = arith.addf %207, %206 : vector<4x32xf32>
    %209 = arith.divf %207, %208 : vector<4x32xf32>
    %210 = arith.mulf %201, %177 : vector<4x32xf32>
    %211 = arith.mulf %195, %203 : vector<4x32xf32>
    %212 = arith.addf %210, %211 : vector<4x32xf32>
    %213 = math.tanh %212 : vector<4x32xf32>
    %214 = arith.mulf %209, %213 : vector<4x32xf32>
    %c4_i32_58 = arith.constant 4 : i32
    %215 = arith.muli %c5_i32, %c4_i32_58 : i32
    %216 = arith.index_cast %215 : i32 to index
    %c0_59 = arith.constant 0 : index
    %217 = vector.load %arg6[%216, %c0_59] : memref<32x64xf32, #tpu.memory_space<vmem>>, vector<4x32xf32>
    tpu.vector_store %arg6[%216, %c0_59], %214 {strides = array<i32>} : memref<32x64xf32, #tpu.memory_space<vmem>>, vector<4x32xf32>,
    %c6_i32 = arith.constant 6 : i32
    %c4_i32_60 = arith.constant 4 : i32
    %218 = arith.muli %c6_i32, %c4_i32_60 : i32
    %219 = arith.index_cast %218 : i32 to index
    %c0_61 = arith.constant 0 : index
    %220 = vector.load %arg7[%219, %c0_61] : memref<32x256xf32, #tpu.memory_space<vmem>>, vector<4x128xf32>
    %cst_62 = arith.constant dense<0.000000e+00> : vector<4x128xf32>
    %221 = tpu.matmul %214, %4, %cst_62 {dimension_numbers = #tpu.dot_dimension_numbers<[1], [0], [0], [1], [0, 0, 1, 1], [], []>} : vector<4x32xf32>, vector<32x128xf32>, vector<4x128xf32> -> vector<4x128xf32>
    %222 = arith.addf %220, %221 : vector<4x128xf32>
    %223 = vector.broadcast %5 : vector<1x128xf32> to vector<4x128xf32>
    %224 = arith.addf %222, %223 : vector<4x128xf32>
    %225 = vector.extract_strided_slice %224 {offsets = [0, 0], sizes = [4, 32], strides = [1, 1]} : vector<4x128xf32> to vector<4x32xf32>
    %226 = arith.negf %225 : vector<4x32xf32>
    %227 = math.exp %226 : vector<4x32xf32>
    %cst_63 = arith.constant 1.000000e+00 : f32
    %228 = vector.broadcast %cst_63 : f32 to vector<4x32xf32>
    %229 = arith.addf %228, %227 : vector<4x32xf32>
    %230 = arith.divf %228, %229 : vector<4x32xf32>
    %231 = vector.extract_strided_slice %224 {offsets = [0, 32], sizes = [4, 32], strides = [1, 1]} : vector<4x128xf32> to vector<4x32xf32>
    %232 = arith.negf %231 : vector<4x32xf32>
    %233 = math.exp %232 : vector<4x32xf32>
    %cst_64 = arith.constant 1.000000e+00 : f32
    %234 = vector.broadcast %cst_64 : f32 to vector<4x32xf32>
    %235 = arith.addf %234, %233 : vector<4x32xf32>
    %236 = arith.divf %234, %235 : vector<4x32xf32>
    %237 = vector.extract_strided_slice %224 {offsets = [0, 64], sizes = [4, 32], strides = [1, 1]} : vector<4x128xf32> to vector<4x32xf32>
    %238 = math.tanh %237 : vector<4x32xf32>
    %239 = vector.extract_strided_slice %224 {offsets = [0, 96], sizes = [4, 32], strides = [1, 1]} : vector<4x128xf32> to vector<4x32xf32>
    %240 = arith.negf %239 : vector<4x32xf32>
    %241 = math.exp %240 : vector<4x32xf32>
    %cst_65 = arith.constant 1.000000e+00 : f32
    %242 = vector.broadcast %cst_65 : f32 to vector<4x32xf32>
    %243 = arith.addf %242, %241 : vector<4x32xf32>
    %244 = arith.divf %242, %243 : vector<4x32xf32>
    %245 = arith.mulf %236, %212 : vector<4x32xf32>
    %246 = arith.mulf %230, %238 : vector<4x32xf32>
    %247 = arith.addf %245, %246 : vector<4x32xf32>
    %248 = math.tanh %247 : vector<4x32xf32>
    %249 = arith.mulf %244, %248 : vector<4x32xf32>
    %c4_i32_66 = arith.constant 4 : i32
    %250 = arith.muli %c6_i32, %c4_i32_66 : i32
    %251 = arith.index_cast %250 : i32 to index
    %c0_67 = arith.constant 0 : index
    %252 = vector.load %arg6[%251, %c0_67] : memref<32x64xf32, #tpu.memory_space<vmem>>, vector<4x32xf32>
    tpu.vector_store %arg6[%251, %c0_67], %249 {strides = array<i32>} : memref<32x64xf32, #tpu.memory_space<vmem>>, vector<4x32xf32>,
    %c7_i32 = arith.constant 7 : i32
    %c4_i32_68 = arith.constant 4 : i32
    %253 = arith.muli %c7_i32, %c4_i32_68 : i32
    %254 = arith.index_cast %253 : i32 to index
    %c0_69 = arith.constant 0 : index
    %255 = vector.load %arg7[%254, %c0_69] : memref<32x256xf32, #tpu.memory_space<vmem>>, vector<4x128xf32>
    %cst_70 = arith.constant dense<0.000000e+00> : vector<4x128xf32>
    %256 = tpu.matmul %249, %4, %cst_70 {dimension_numbers = #tpu.dot_dimension_numbers<[1], [0], [0], [1], [0, 0, 1, 1], [], []>} : vector<4x32xf32>, vector<32x128xf32>, vector<4x128xf32> -> vector<4x128xf32>
    %257 = arith.addf %255, %256 : vector<4x128xf32>
    %258 = vector.broadcast %5 : vector<1x128xf32> to vector<4x128xf32>
    %259 = arith.addf %257, %258 : vector<4x128xf32>
    %260 = vector.extract_strided_slice %259 {offsets = [0, 0], sizes = [4, 32], strides = [1, 1]} : vector<4x128xf32> to vector<4x32xf32>
    %261 = arith.negf %260 : vector<4x32xf32>
    %262 = math.exp %261 : vector<4x32xf32>
    %cst_71 = arith.constant 1.000000e+00 : f32
    %263 = vector.broadcast %cst_71 : f32 to vector<4x32xf32>
    %264 = arith.addf %263, %262 : vector<4x32xf32>
    %265 = arith.divf %263, %264 : vector<4x32xf32>
    %266 = vector.extract_strided_slice %259 {offsets = [0, 32], sizes = [4, 32], strides = [1, 1]} : vector<4x128xf32> to vector<4x32xf32>
    %267 = arith.negf %266 : vector<4x32xf32>
    %268 = math.exp %267 : vector<4x32xf32>
    %cst_72 = arith.constant 1.000000e+00 : f32
    %269 = vector.broadcast %cst_72 : f32 to vector<4x32xf32>
    %270 = arith.addf %269, %268 : vector<4x32xf32>
    %271 = arith.divf %269, %270 : vector<4x32xf32>
    %272 = vector.extract_strided_slice %259 {offsets = [0, 64], sizes = [4, 32], strides = [1, 1]} : vector<4x128xf32> to vector<4x32xf32>
    %273 = math.tanh %272 : vector<4x32xf32>
    %274 = vector.extract_strided_slice %259 {offsets = [0, 96], sizes = [4, 32], strides = [1, 1]} : vector<4x128xf32> to vector<4x32xf32>
    %275 = arith.negf %274 : vector<4x32xf32>
    %276 = math.exp %275 : vector<4x32xf32>
    %cst_73 = arith.constant 1.000000e+00 : f32
    %277 = vector.broadcast %cst_73 : f32 to vector<4x32xf32>
    %278 = arith.addf %277, %276 : vector<4x32xf32>
    %279 = arith.divf %277, %278 : vector<4x32xf32>
    %280 = arith.mulf %271, %247 : vector<4x32xf32>
    %281 = arith.mulf %265, %273 : vector<4x32xf32>
    %282 = arith.addf %280, %281 : vector<4x32xf32>
    %283 = math.tanh %282 : vector<4x32xf32>
    %284 = arith.mulf %279, %283 : vector<4x32xf32>
    %c4_i32_74 = arith.constant 4 : i32
    %285 = arith.muli %c7_i32, %c4_i32_74 : i32
    %286 = arith.index_cast %285 : i32 to index
    %c0_75 = arith.constant 0 : index
    %287 = vector.load %arg6[%286, %c0_75] : memref<32x64xf32, #tpu.memory_space<vmem>>, vector<4x32xf32>
    tpu.vector_store %arg6[%286, %c0_75], %284 {strides = array<i32>} : memref<32x64xf32, #tpu.memory_space<vmem>>, vector<4x32xf32>,
    %c8_i32 = arith.constant 8 : i32
    %c0_76 = arith.constant 0 : index
    %c0_77 = arith.constant 0 : index
    %288 = vector.load %arg3[%c0_76, %c0_77] : memref<32x128xf32, #tpu.memory_space<vmem>>, vector<32x128xf32>
    %c0_i32_78 = arith.constant 0 : i32
    %c7_i32_79 = arith.constant 7 : i32
    %289 = arith.subi %c7_i32_79, %c0_i32_78 : i32
    %c4_i32_80 = arith.constant 4 : i32
    %290 = arith.muli %289, %c4_i32_80 : i32
    %291 = arith.index_cast %290 : i32 to index
    %c128 = arith.constant 128 : index
    %292 = vector.load %arg7[%291, %c128] : memref<32x256xf32, #tpu.memory_space<vmem>>, vector<4x128xf32>
    %cst_81 = arith.constant dense<0.000000e+00> : vector<4x128xf32>
    %293 = tpu.matmul %7, %288, %cst_81 {dimension_numbers = #tpu.dot_dimension_numbers<[1], [0], [0], [1], [0, 0, 1, 1], [], []>} : vector<4x32xf32>, vector<32x128xf32>, vector<4x128xf32> -> vector<4x128xf32>
    %294 = arith.addf %292, %293 : vector<4x128xf32>
    %295 = vector.broadcast %6 : vector<1x128xf32> to vector<4x128xf32>
    %296 = arith.addf %294, %295 : vector<4x128xf32>
    %297 = vector.extract_strided_slice %296 {offsets = [0, 0], sizes = [4, 32], strides = [1, 1]} : vector<4x128xf32> to vector<4x32xf32>
    %298 = arith.negf %297 : vector<4x32xf32>
    %299 = math.exp %298 : vector<4x32xf32>
    %cst_82 = arith.constant 1.000000e+00 : f32
    %300 = vector.broadcast %cst_82 : f32 to vector<4x32xf32>
    %301 = arith.addf %300, %299 : vector<4x32xf32>
    %302 = arith.divf %300, %301 : vector<4x32xf32>
    %303 = vector.extract_strided_slice %296 {offsets = [0, 32], sizes = [4, 32], strides = [1, 1]} : vector<4x128xf32> to vector<4x32xf32>
    %304 = arith.negf %303 : vector<4x32xf32>
    %305 = math.exp %304 : vector<4x32xf32>
    %cst_83 = arith.constant 1.000000e+00 : f32
    %306 = vector.broadcast %cst_83 : f32 to vector<4x32xf32>
    %307 = arith.addf %306, %305 : vector<4x32xf32>
    %308 = arith.divf %306, %307 : vector<4x32xf32>
    %309 = vector.extract_strided_slice %296 {offsets = [0, 64], sizes = [4, 32], strides = [1, 1]} : vector<4x128xf32> to vector<4x32xf32>
    %310 = math.tanh %309 : vector<4x32xf32>
    %311 = vector.extract_strided_slice %296 {offsets = [0, 96], sizes = [4, 32], strides = [1, 1]} : vector<4x128xf32> to vector<4x32xf32>
    %312 = arith.negf %311 : vector<4x32xf32>
    %313 = math.exp %312 : vector<4x32xf32>
    %cst_84 = arith.constant 1.000000e+00 : f32
    %314 = vector.broadcast %cst_84 : f32 to vector<4x32xf32>
    %315 = arith.addf %314, %313 : vector<4x32xf32>
    %316 = arith.divf %314, %315 : vector<4x32xf32>
    %317 = arith.mulf %308, %7 : vector<4x32xf32>
    %318 = arith.mulf %302, %310 : vector<4x32xf32>
    %319 = arith.addf %317, %318 : vector<4x32xf32>
    %320 = math.tanh %319 : vector<4x32xf32>
    %321 = arith.mulf %316, %320 : vector<4x32xf32>
    %c4_i32_85 = arith.constant 4 : i32
    %322 = arith.muli %289, %c4_i32_85 : i32
    %323 = arith.index_cast %322 : i32 to index
    %c32 = arith.constant 32 : index
    %324 = vector.load %arg6[%323, %c32] : memref<32x64xf32, #tpu.memory_space<vmem>>, vector<4x32xf32>
    tpu.vector_store %arg6[%323, %c32], %321 {strides = array<i32>} : memref<32x64xf32, #tpu.memory_space<vmem>>, vector<4x32xf32>,
    %c1_i32_86 = arith.constant 1 : i32
    %c7_i32_87 = arith.constant 7 : i32
    %325 = arith.subi %c7_i32_87, %c1_i32_86 : i32
    %c4_i32_88 = arith.constant 4 : i32
    %326 = arith.muli %325, %c4_i32_88 : i32
    %327 = arith.index_cast %326 : i32 to index
    %c128_89 = arith.constant 128 : index
    %328 = vector.load %arg7[%327, %c128_89] : memref<32x256xf32, #tpu.memory_space<vmem>>, vector<4x128xf32>
    %cst_90 = arith.constant dense<0.000000e+00> : vector<4x128xf32>
    %329 = tpu.matmul %321, %288, %cst_90 {dimension_numbers = #tpu.dot_dimension_numbers<[1], [0], [0], [1], [0, 0, 1, 1], [], []>} : vector<4x32xf32>, vector<32x128xf32>, vector<4x128xf32> -> vector<4x128xf32>
    %330 = arith.addf %328, %329 : vector<4x128xf32>
    %331 = vector.broadcast %6 : vector<1x128xf32> to vector<4x128xf32>
    %332 = arith.addf %330, %331 : vector<4x128xf32>
    %333 = vector.extract_strided_slice %332 {offsets = [0, 0], sizes = [4, 32], strides = [1, 1]} : vector<4x128xf32> to vector<4x32xf32>
    %334 = arith.negf %333 : vector<4x32xf32>
    %335 = math.exp %334 : vector<4x32xf32>
    %cst_91 = arith.constant 1.000000e+00 : f32
    %336 = vector.broadcast %cst_91 : f32 to vector<4x32xf32>
    %337 = arith.addf %336, %335 : vector<4x32xf32>
    %338 = arith.divf %336, %337 : vector<4x32xf32>
    %339 = vector.extract_strided_slice %332 {offsets = [0, 32], sizes = [4, 32], strides = [1, 1]} : vector<4x128xf32> to vector<4x32xf32>
    %340 = arith.negf %339 : vector<4x32xf32>
    %341 = math.exp %340 : vector<4x32xf32>
    %cst_92 = arith.constant 1.000000e+00 : f32
    %342 = vector.broadcast %cst_92 : f32 to vector<4x32xf32>
    %343 = arith.addf %342, %341 : vector<4x32xf32>
    %344 = arith.divf %342, %343 : vector<4x32xf32>
    %345 = vector.extract_strided_slice %332 {offsets = [0, 64], sizes = [4, 32], strides = [1, 1]} : vector<4x128xf32> to vector<4x32xf32>
    %346 = math.tanh %345 : vector<4x32xf32>
    %347 = vector.extract_strided_slice %332 {offsets = [0, 96], sizes = [4, 32], strides = [1, 1]} : vector<4x128xf32> to vector<4x32xf32>
    %348 = arith.negf %347 : vector<4x32xf32>
    %349 = math.exp %348 : vector<4x32xf32>
    %cst_93 = arith.constant 1.000000e+00 : f32
    %350 = vector.broadcast %cst_93 : f32 to vector<4x32xf32>
    %351 = arith.addf %350, %349 : vector<4x32xf32>
    %352 = arith.divf %350, %351 : vector<4x32xf32>
    %353 = arith.mulf %344, %319 : vector<4x32xf32>
    %354 = arith.mulf %338, %346 : vector<4x32xf32>
    %355 = arith.addf %353, %354 : vector<4x32xf32>
    %356 = math.tanh %355 : vector<4x32xf32>
    %357 = arith.mulf %352, %356 : vector<4x32xf32>
    %c4_i32_94 = arith.constant 4 : i32
    %358 = arith.muli %325, %c4_i32_94 : i32
    %359 = arith.index_cast %358 : i32 to index
    %c32_95 = arith.constant 32 : index
    %360 = vector.load %arg6[%359, %c32_95] : memref<32x64xf32, #tpu.memory_space<vmem>>, vector<4x32xf32>
    tpu.vector_store %arg6[%359, %c32_95], %357 {strides = array<i32>} : memref<32x64xf32, #tpu.memory_space<vmem>>, vector<4x32xf32>,
    %c2_i32_96 = arith.constant 2 : i32
    %c7_i32_97 = arith.constant 7 : i32
    %361 = arith.subi %c7_i32_97, %c2_i32_96 : i32
    %c4_i32_98 = arith.constant 4 : i32
    %362 = arith.muli %361, %c4_i32_98 : i32
    %363 = arith.index_cast %362 : i32 to index
    %c128_99 = arith.constant 128 : index
    %364 = vector.load %arg7[%363, %c128_99] : memref<32x256xf32, #tpu.memory_space<vmem>>, vector<4x128xf32>
    %cst_100 = arith.constant dense<0.000000e+00> : vector<4x128xf32>
    %365 = tpu.matmul %357, %288, %cst_100 {dimension_numbers = #tpu.dot_dimension_numbers<[1], [0], [0], [1], [0, 0, 1, 1], [], []>} : vector<4x32xf32>, vector<32x128xf32>, vector<4x128xf32> -> vector<4x128xf32>
    %366 = arith.addf %364, %365 : vector<4x128xf32>
    %367 = vector.broadcast %6 : vector<1x128xf32> to vector<4x128xf32>
    %368 = arith.addf %366, %367 : vector<4x128xf32>
    %369 = vector.extract_strided_slice %368 {offsets = [0, 0], sizes = [4, 32], strides = [1, 1]} : vector<4x128xf32> to vector<4x32xf32>
    %370 = arith.negf %369 : vector<4x32xf32>
    %371 = math.exp %370 : vector<4x32xf32>
    %cst_101 = arith.constant 1.000000e+00 : f32
    %372 = vector.broadcast %cst_101 : f32 to vector<4x32xf32>
    %373 = arith.addf %372, %371 : vector<4x32xf32>
    %374 = arith.divf %372, %373 : vector<4x32xf32>
    %375 = vector.extract_strided_slice %368 {offsets = [0, 32], sizes = [4, 32], strides = [1, 1]} : vector<4x128xf32> to vector<4x32xf32>
    %376 = arith.negf %375 : vector<4x32xf32>
    %377 = math.exp %376 : vector<4x32xf32>
    %cst_102 = arith.constant 1.000000e+00 : f32
    %378 = vector.broadcast %cst_102 : f32 to vector<4x32xf32>
    %379 = arith.addf %378, %377 : vector<4x32xf32>
    %380 = arith.divf %378, %379 : vector<4x32xf32>
    %381 = vector.extract_strided_slice %368 {offsets = [0, 64], sizes = [4, 32], strides = [1, 1]} : vector<4x128xf32> to vector<4x32xf32>
    %382 = math.tanh %381 : vector<4x32xf32>
    %383 = vector.extract_strided_slice %368 {offsets = [0, 96], sizes = [4, 32], strides = [1, 1]} : vector<4x128xf32> to vector<4x32xf32>
    %384 = arith.negf %383 : vector<4x32xf32>
    %385 = math.exp %384 : vector<4x32xf32>
    %cst_103 = arith.constant 1.000000e+00 : f32
    %386 = vector.broadcast %cst_103 : f32 to vector<4x32xf32>
    %387 = arith.addf %386, %385 : vector<4x32xf32>
    %388 = arith.divf %386, %387 : vector<4x32xf32>
    %389 = arith.mulf %380, %355 : vector<4x32xf32>
    %390 = arith.mulf %374, %382 : vector<4x32xf32>
    %391 = arith.addf %389, %390 : vector<4x32xf32>
    %392 = math.tanh %391 : vector<4x32xf32>
    %393 = arith.mulf %388, %392 : vector<4x32xf32>
    %c4_i32_104 = arith.constant 4 : i32
    %394 = arith.muli %361, %c4_i32_104 : i32
    %395 = arith.index_cast %394 : i32 to index
    %c32_105 = arith.constant 32 : index
    %396 = vector.load %arg6[%395, %c32_105] : memref<32x64xf32, #tpu.memory_space<vmem>>, vector<4x32xf32>
    tpu.vector_store %arg6[%395, %c32_105], %393 {strides = array<i32>} : memref<32x64xf32, #tpu.memory_space<vmem>>, vector<4x32xf32>,
    %c3_i32_106 = arith.constant 3 : i32
    %c7_i32_107 = arith.constant 7 : i32
    %397 = arith.subi %c7_i32_107, %c3_i32_106 : i32
    %c4_i32_108 = arith.constant 4 : i32
    %398 = arith.muli %397, %c4_i32_108 : i32
    %399 = arith.index_cast %398 : i32 to index
    %c128_109 = arith.constant 128 : index
    %400 = vector.load %arg7[%399, %c128_109] : memref<32x256xf32, #tpu.memory_space<vmem>>, vector<4x128xf32>
    %cst_110 = arith.constant dense<0.000000e+00> : vector<4x128xf32>
    %401 = tpu.matmul %393, %288, %cst_110 {dimension_numbers = #tpu.dot_dimension_numbers<[1], [0], [0], [1], [0, 0, 1, 1], [], []>} : vector<4x32xf32>, vector<32x128xf32>, vector<4x128xf32> -> vector<4x128xf32>
    %402 = arith.addf %400, %401 : vector<4x128xf32>
    %403 = vector.broadcast %6 : vector<1x128xf32> to vector<4x128xf32>
    %404 = arith.addf %402, %403 : vector<4x128xf32>
    %405 = vector.extract_strided_slice %404 {offsets = [0, 0], sizes = [4, 32], strides = [1, 1]} : vector<4x128xf32> to vector<4x32xf32>
    %406 = arith.negf %405 : vector<4x32xf32>
    %407 = math.exp %406 : vector<4x32xf32>
    %cst_111 = arith.constant 1.000000e+00 : f32
    %408 = vector.broadcast %cst_111 : f32 to vector<4x32xf32>
    %409 = arith.addf %408, %407 : vector<4x32xf32>
    %410 = arith.divf %408, %409 : vector<4x32xf32>
    %411 = vector.extract_strided_slice %404 {offsets = [0, 32], sizes = [4, 32], strides = [1, 1]} : vector<4x128xf32> to vector<4x32xf32>
    %412 = arith.negf %411 : vector<4x32xf32>
    %413 = math.exp %412 : vector<4x32xf32>
    %cst_112 = arith.constant 1.000000e+00 : f32
    %414 = vector.broadcast %cst_112 : f32 to vector<4x32xf32>
    %415 = arith.addf %414, %413 : vector<4x32xf32>
    %416 = arith.divf %414, %415 : vector<4x32xf32>
    %417 = vector.extract_strided_slice %404 {offsets = [0, 64], sizes = [4, 32], strides = [1, 1]} : vector<4x128xf32> to vector<4x32xf32>
    %418 = math.tanh %417 : vector<4x32xf32>
    %419 = vector.extract_strided_slice %404 {offsets = [0, 96], sizes = [4, 32], strides = [1, 1]} : vector<4x128xf32> to vector<4x32xf32>
    %420 = arith.negf %419 : vector<4x32xf32>
    %421 = math.exp %420 : vector<4x32xf32>
    %cst_113 = arith.constant 1.000000e+00 : f32
    %422 = vector.broadcast %cst_113 : f32 to vector<4x32xf32>
    %423 = arith.addf %422, %421 : vector<4x32xf32>
    %424 = arith.divf %422, %423 : vector<4x32xf32>
    %425 = arith.mulf %416, %391 : vector<4x32xf32>
    %426 = arith.mulf %410, %418 : vector<4x32xf32>
    %427 = arith.addf %425, %426 : vector<4x32xf32>
    %428 = math.tanh %427 : vector<4x32xf32>
    %429 = arith.mulf %424, %428 : vector<4x32xf32>
    %c4_i32_114 = arith.constant 4 : i32
    %430 = arith.muli %397, %c4_i32_114 : i32
    %431 = arith.index_cast %430 : i32 to index
    %c32_115 = arith.constant 32 : index
    %432 = vector.load %arg6[%431, %c32_115] : memref<32x64xf32, #tpu.memory_space<vmem>>, vector<4x32xf32>
    tpu.vector_store %arg6[%431, %c32_115], %429 {strides = array<i32>} : memref<32x64xf32, #tpu.memory_space<vmem>>, vector<4x32xf32>,
    %c4_i32_116 = arith.constant 4 : i32
    %c7_i32_117 = arith.constant 7 : i32
    %433 = arith.subi %c7_i32_117, %c4_i32_116 : i32
    %c4_i32_118 = arith.constant 4 : i32
    %434 = arith.muli %433, %c4_i32_118 : i32
    %435 = arith.index_cast %434 : i32 to index
    %c128_119 = arith.constant 128 : index
    %436 = vector.load %arg7[%435, %c128_119] : memref<32x256xf32, #tpu.memory_space<vmem>>, vector<4x128xf32>
    %cst_120 = arith.constant dense<0.000000e+00> : vector<4x128xf32>
    %437 = tpu.matmul %429, %288, %cst_120 {dimension_numbers = #tpu.dot_dimension_numbers<[1], [0], [0], [1], [0, 0, 1, 1], [], []>} : vector<4x32xf32>, vector<32x128xf32>, vector<4x128xf32> -> vector<4x128xf32>
    %438 = arith.addf %436, %437 : vector<4x128xf32>
    %439 = vector.broadcast %6 : vector<1x128xf32> to vector<4x128xf32>
    %440 = arith.addf %438, %439 : vector<4x128xf32>
    %441 = vector.extract_strided_slice %440 {offsets = [0, 0], sizes = [4, 32], strides = [1, 1]} : vector<4x128xf32> to vector<4x32xf32>
    %442 = arith.negf %441 : vector<4x32xf32>
    %443 = math.exp %442 : vector<4x32xf32>
    %cst_121 = arith.constant 1.000000e+00 : f32
    %444 = vector.broadcast %cst_121 : f32 to vector<4x32xf32>
    %445 = arith.addf %444, %443 : vector<4x32xf32>
    %446 = arith.divf %444, %445 : vector<4x32xf32>
    %447 = vector.extract_strided_slice %440 {offsets = [0, 32], sizes = [4, 32], strides = [1, 1]} : vector<4x128xf32> to vector<4x32xf32>
    %448 = arith.negf %447 : vector<4x32xf32>
    %449 = math.exp %448 : vector<4x32xf32>
    %cst_122 = arith.constant 1.000000e+00 : f32
    %450 = vector.broadcast %cst_122 : f32 to vector<4x32xf32>
    %451 = arith.addf %450, %449 : vector<4x32xf32>
    %452 = arith.divf %450, %451 : vector<4x32xf32>
    %453 = vector.extract_strided_slice %440 {offsets = [0, 64], sizes = [4, 32], strides = [1, 1]} : vector<4x128xf32> to vector<4x32xf32>
    %454 = math.tanh %453 : vector<4x32xf32>
    %455 = vector.extract_strided_slice %440 {offsets = [0, 96], sizes = [4, 32], strides = [1, 1]} : vector<4x128xf32> to vector<4x32xf32>
    %456 = arith.negf %455 : vector<4x32xf32>
    %457 = math.exp %456 : vector<4x32xf32>
    %cst_123 = arith.constant 1.000000e+00 : f32
    %458 = vector.broadcast %cst_123 : f32 to vector<4x32xf32>
    %459 = arith.addf %458, %457 : vector<4x32xf32>
    %460 = arith.divf %458, %459 : vector<4x32xf32>
    %461 = arith.mulf %452, %427 : vector<4x32xf32>
    %462 = arith.mulf %446, %454 : vector<4x32xf32>
    %463 = arith.addf %461, %462 : vector<4x32xf32>
    %464 = math.tanh %463 : vector<4x32xf32>
    %465 = arith.mulf %460, %464 : vector<4x32xf32>
    %c4_i32_124 = arith.constant 4 : i32
    %466 = arith.muli %433, %c4_i32_124 : i32
    %467 = arith.index_cast %466 : i32 to index
    %c32_125 = arith.constant 32 : index
    %468 = vector.load %arg6[%467, %c32_125] : memref<32x64xf32, #tpu.memory_space<vmem>>, vector<4x32xf32>
    tpu.vector_store %arg6[%467, %c32_125], %465 {strides = array<i32>} : memref<32x64xf32, #tpu.memory_space<vmem>>, vector<4x32xf32>,
    %c5_i32_126 = arith.constant 5 : i32
    %c7_i32_127 = arith.constant 7 : i32
    %469 = arith.subi %c7_i32_127, %c5_i32_126 : i32
    %c4_i32_128 = arith.constant 4 : i32
    %470 = arith.muli %469, %c4_i32_128 : i32
    %471 = arith.index_cast %470 : i32 to index
    %c128_129 = arith.constant 128 : index
    %472 = vector.load %arg7[%471, %c128_129] : memref<32x256xf32, #tpu.memory_space<vmem>>, vector<4x128xf32>
    %cst_130 = arith.constant dense<0.000000e+00> : vector<4x128xf32>
    %473 = tpu.matmul %465, %288, %cst_130 {dimension_numbers = #tpu.dot_dimension_numbers<[1], [0], [0], [1], [0, 0, 1, 1], [], []>} : vector<4x32xf32>, vector<32x128xf32>, vector<4x128xf32> -> vector<4x128xf32>
    %474 = arith.addf %472, %473 : vector<4x128xf32>
    %475 = vector.broadcast %6 : vector<1x128xf32> to vector<4x128xf32>
    %476 = arith.addf %474, %475 : vector<4x128xf32>
    %477 = vector.extract_strided_slice %476 {offsets = [0, 0], sizes = [4, 32], strides = [1, 1]} : vector<4x128xf32> to vector<4x32xf32>
    %478 = arith.negf %477 : vector<4x32xf32>
    %479 = math.exp %478 : vector<4x32xf32>
    %cst_131 = arith.constant 1.000000e+00 : f32
    %480 = vector.broadcast %cst_131 : f32 to vector<4x32xf32>
    %481 = arith.addf %480, %479 : vector<4x32xf32>
    %482 = arith.divf %480, %481 : vector<4x32xf32>
    %483 = vector.extract_strided_slice %476 {offsets = [0, 32], sizes = [4, 32], strides = [1, 1]} : vector<4x128xf32> to vector<4x32xf32>
    %484 = arith.negf %483 : vector<4x32xf32>
    %485 = math.exp %484 : vector<4x32xf32>
    %cst_132 = arith.constant 1.000000e+00 : f32
    %486 = vector.broadcast %cst_132 : f32 to vector<4x32xf32>
    %487 = arith.addf %486, %485 : vector<4x32xf32>
    %488 = arith.divf %486, %487 : vector<4x32xf32>
    %489 = vector.extract_strided_slice %476 {offsets = [0, 64], sizes = [4, 32], strides = [1, 1]} : vector<4x128xf32> to vector<4x32xf32>
    %490 = math.tanh %489 : vector<4x32xf32>
    %491 = vector.extract_strided_slice %476 {offsets = [0, 96], sizes = [4, 32], strides = [1, 1]} : vector<4x128xf32> to vector<4x32xf32>
    %492 = arith.negf %491 : vector<4x32xf32>
    %493 = math.exp %492 : vector<4x32xf32>
    %cst_133 = arith.constant 1.000000e+00 : f32
    %494 = vector.broadcast %cst_133 : f32 to vector<4x32xf32>
    %495 = arith.addf %494, %493 : vector<4x32xf32>
    %496 = arith.divf %494, %495 : vector<4x32xf32>
    %497 = arith.mulf %488, %463 : vector<4x32xf32>
    %498 = arith.mulf %482, %490 : vector<4x32xf32>
    %499 = arith.addf %497, %498 : vector<4x32xf32>
    %500 = math.tanh %499 : vector<4x32xf32>
    %501 = arith.mulf %496, %500 : vector<4x32xf32>
    %c4_i32_134 = arith.constant 4 : i32
    %502 = arith.muli %469, %c4_i32_134 : i32
    %503 = arith.index_cast %502 : i32 to index
    %c32_135 = arith.constant 32 : index
    %504 = vector.load %arg6[%503, %c32_135] : memref<32x64xf32, #tpu.memory_space<vmem>>, vector<4x32xf32>
    tpu.vector_store %arg6[%503, %c32_135], %501 {strides = array<i32>} : memref<32x64xf32, #tpu.memory_space<vmem>>, vector<4x32xf32>,
    %c6_i32_136 = arith.constant 6 : i32
    %c7_i32_137 = arith.constant 7 : i32
    %505 = arith.subi %c7_i32_137, %c6_i32_136 : i32
    %c4_i32_138 = arith.constant 4 : i32
    %506 = arith.muli %505, %c4_i32_138 : i32
    %507 = arith.index_cast %506 : i32 to index
    %c128_139 = arith.constant 128 : index
    %508 = vector.load %arg7[%507, %c128_139] : memref<32x256xf32, #tpu.memory_space<vmem>>, vector<4x128xf32>
    %cst_140 = arith.constant dense<0.000000e+00> : vector<4x128xf32>
    %509 = tpu.matmul %501, %288, %cst_140 {dimension_numbers = #tpu.dot_dimension_numbers<[1], [0], [0], [1], [0, 0, 1, 1], [], []>} : vector<4x32xf32>, vector<32x128xf32>, vector<4x128xf32> -> vector<4x128xf32>
    %510 = arith.addf %508, %509 : vector<4x128xf32>
    %511 = vector.broadcast %6 : vector<1x128xf32> to vector<4x128xf32>
    %512 = arith.addf %510, %511 : vector<4x128xf32>
    %513 = vector.extract_strided_slice %512 {offsets = [0, 0], sizes = [4, 32], strides = [1, 1]} : vector<4x128xf32> to vector<4x32xf32>
    %514 = arith.negf %513 : vector<4x32xf32>
    %515 = math.exp %514 : vector<4x32xf32>
    %cst_141 = arith.constant 1.000000e+00 : f32
    %516 = vector.broadcast %cst_141 : f32 to vector<4x32xf32>
    %517 = arith.addf %516, %515 : vector<4x32xf32>
    %518 = arith.divf %516, %517 : vector<4x32xf32>
    %519 = vector.extract_strided_slice %512 {offsets = [0, 32], sizes = [4, 32], strides = [1, 1]} : vector<4x128xf32> to vector<4x32xf32>
    %520 = arith.negf %519 : vector<4x32xf32>
    %521 = math.exp %520 : vector<4x32xf32>
    %cst_142 = arith.constant 1.000000e+00 : f32
    %522 = vector.broadcast %cst_142 : f32 to vector<4x32xf32>
    %523 = arith.addf %522, %521 : vector<4x32xf32>
    %524 = arith.divf %522, %523 : vector<4x32xf32>
    %525 = vector.extract_strided_slice %512 {offsets = [0, 64], sizes = [4, 32], strides = [1, 1]} : vector<4x128xf32> to vector<4x32xf32>
    %526 = math.tanh %525 : vector<4x32xf32>
    %527 = vector.extract_strided_slice %512 {offsets = [0, 96], sizes = [4, 32], strides = [1, 1]} : vector<4x128xf32> to vector<4x32xf32>
    %528 = arith.negf %527 : vector<4x32xf32>
    %529 = math.exp %528 : vector<4x32xf32>
    %cst_143 = arith.constant 1.000000e+00 : f32
    %530 = vector.broadcast %cst_143 : f32 to vector<4x32xf32>
    %531 = arith.addf %530, %529 : vector<4x32xf32>
    %532 = arith.divf %530, %531 : vector<4x32xf32>
    %533 = arith.mulf %524, %499 : vector<4x32xf32>
    %534 = arith.mulf %518, %526 : vector<4x32xf32>
    %535 = arith.addf %533, %534 : vector<4x32xf32>
    %536 = math.tanh %535 : vector<4x32xf32>
    %537 = arith.mulf %532, %536 : vector<4x32xf32>
    %c4_i32_144 = arith.constant 4 : i32
    %538 = arith.muli %505, %c4_i32_144 : i32
    %539 = arith.index_cast %538 : i32 to index
    %c32_145 = arith.constant 32 : index
    %540 = vector.load %arg6[%539, %c32_145] : memref<32x64xf32, #tpu.memory_space<vmem>>, vector<4x32xf32>
    tpu.vector_store %arg6[%539, %c32_145], %537 {strides = array<i32>} : memref<32x64xf32, #tpu.memory_space<vmem>>, vector<4x32xf32>,
    %c7_i32_146 = arith.constant 7 : i32
    %c7_i32_147 = arith.constant 7 : i32
    %541 = arith.subi %c7_i32_147, %c7_i32_146 : i32
    %c4_i32_148 = arith.constant 4 : i32
    %542 = arith.muli %541, %c4_i32_148 : i32
    %543 = arith.index_cast %542 : i32 to index
    %c128_149 = arith.constant 128 : index
    %544 = vector.load %arg7[%543, %c128_149] : memref<32x256xf32, #tpu.memory_space<vmem>>, vector<4x128xf32>
    %cst_150 = arith.constant dense<0.000000e+00> : vector<4x128xf32>
    %545 = tpu.matmul %537, %288, %cst_150 {dimension_numbers = #tpu.dot_dimension_numbers<[1], [0], [0], [1], [0, 0, 1, 1], [], []>} : vector<4x32xf32>, vector<32x128xf32>, vector<4x128xf32> -> vector<4x128xf32>
    %546 = arith.addf %544, %545 : vector<4x128xf32>
    %547 = vector.broadcast %6 : vector<1x128xf32> to vector<4x128xf32>
    %548 = arith.addf %546, %547 : vector<4x128xf32>
    %549 = vector.extract_strided_slice %548 {offsets = [0, 0], sizes = [4, 32], strides = [1, 1]} : vector<4x128xf32> to vector<4x32xf32>
    %550 = arith.negf %549 : vector<4x32xf32>
    %551 = math.exp %550 : vector<4x32xf32>
    %cst_151 = arith.constant 1.000000e+00 : f32
    %552 = vector.broadcast %cst_151 : f32 to vector<4x32xf32>
    %553 = arith.addf %552, %551 : vector<4x32xf32>
    %554 = arith.divf %552, %553 : vector<4x32xf32>
    %555 = vector.extract_strided_slice %548 {offsets = [0, 32], sizes = [4, 32], strides = [1, 1]} : vector<4x128xf32> to vector<4x32xf32>
    %556 = arith.negf %555 : vector<4x32xf32>
    %557 = math.exp %556 : vector<4x32xf32>
    %cst_152 = arith.constant 1.000000e+00 : f32
    %558 = vector.broadcast %cst_152 : f32 to vector<4x32xf32>
    %559 = arith.addf %558, %557 : vector<4x32xf32>
    %560 = arith.divf %558, %559 : vector<4x32xf32>
    %561 = vector.extract_strided_slice %548 {offsets = [0, 64], sizes = [4, 32], strides = [1, 1]} : vector<4x128xf32> to vector<4x32xf32>
    %562 = math.tanh %561 : vector<4x32xf32>
    %563 = vector.extract_strided_slice %548 {offsets = [0, 96], sizes = [4, 32], strides = [1, 1]} : vector<4x128xf32> to vector<4x32xf32>
    %564 = arith.negf %563 : vector<4x32xf32>
    %565 = math.exp %564 : vector<4x32xf32>
    %cst_153 = arith.constant 1.000000e+00 : f32
    %566 = vector.broadcast %cst_153 : f32 to vector<4x32xf32>
    %567 = arith.addf %566, %565 : vector<4x32xf32>
    %568 = arith.divf %566, %567 : vector<4x32xf32>
    %569 = arith.mulf %560, %535 : vector<4x32xf32>
    %570 = arith.mulf %554, %562 : vector<4x32xf32>
    %571 = arith.addf %569, %570 : vector<4x32xf32>
    %572 = math.tanh %571 : vector<4x32xf32>
    %573 = arith.mulf %568, %572 : vector<4x32xf32>
    %c4_i32_154 = arith.constant 4 : i32
    %574 = arith.muli %541, %c4_i32_154 : i32
    %575 = arith.index_cast %574 : i32 to index
    %c32_155 = arith.constant 32 : index
    %576 = vector.load %arg6[%575, %c32_155] : memref<32x64xf32, #tpu.memory_space<vmem>>, vector<4x32xf32>
    tpu.vector_store %arg6[%575, %c32_155], %573 {strides = array<i32>} : memref<32x64xf32, #tpu.memory_space<vmem>>, vector<4x32xf32>,
    %c8_i32_156 = arith.constant 8 : i32
    return
  }
}

</mosaic_0001>

<llo_original>
// kernel: tpu_custom_call.1
$region0: #{tpu_custom_call.1}
  #allocation0 [shape = 'u32[]', space=smem, size = 0x4, offset = 0x4, fixed_abs, tag = 'smem constant byte address 0x4 - core index']
  #allocation1 [shape = 'u32[144,128]{1,0:T(1,128)}', space=vmem, size = 0x12000, scoped, tag = 'internal scratch']
  #allocation2 [shape = 'f32[32,256]{1,0:T(8,128)}', space=vmem, size = 0x8000, scoped, tag = 'scratch operand']
  %s0 = inlined_call_operand.vmem [shape: f32[32,16], index: 0, kind: input, shape index: {}]
  %s1 = inlined_call_operand.vmem [shape: f32[16,256], index: 1, kind: input, shape index: {}]
  %s2 = inlined_call_operand.hbm [shape: f32[32,128], index: 2, kind: input, shape index: {}]
  %s3 = inlined_call_operand.hbm [shape: f32[32,128], index: 3, kind: input, shape index: {}]
  %s4 = inlined_call_operand.vmem [shape: f32[1,128], index: 4, kind: input, shape index: {}]
  %s5 = inlined_call_operand.vmem [shape: f32[1,128], index: 5, kind: input, shape index: {}]
  %s6 = inlined_call_operand.hbm [shape: f32[32,64], index: 6, kind: output, shape index: {}]
  %s7 = sld [smem:[#allocation0]]
  $region42: #{tpu_custom_call.1} parent=0
    _
  %s9 = ssub.s32 1, %s7
  %s10 = scalar_select 0, %s9, %s7
  $region1: #{tpu_custom_call.1} parent=0
    #allocation3 [shape = 'u8[16384]{0}', space=vmem, size = 0x4000, scoped, tag = 'input window, operand 2, single buffered']
    #allocation4 [shape = 's32[1]{0}', space=sflag, size = 0x4, scoped, tag = 'scoped memory for tpu_custom_call.1']
    #allocation5 [shape = 's32[1]{0}', space=sflag, size = 0x4, scoped, tag = 'scoped memory for tpu_custom_call.1']
    #allocation6 [shape = 'u8[16384]{0}', space=vmem, size = 0x4000, scoped, tag = 'input window, operand 3, single buffered']
    #allocation7 [shape = 's32[1]{0}', space=sflag, size = 0x4, scoped, tag = 'scoped memory for tpu_custom_call.1']
    #allocation8 [shape = 'u8[16384]{0}', space=vmem, size = 0x4000, scoped, tag = 'output window, operand 0, single buffered']
    %11 = vsyncpa [#allocation4], 0
    %12 = vsyncpa [#allocation7], 0
    %13 = vsyncpa [#allocation5], 0
    // Predicated region
    $region2: #{tpu_custom_call.1} parent=1 // pred_check
      _
    $region3: #{tpu_custom_call.1} parent=1 // pred_check_branch
      %15 = sbr.rel (0) target = $region5
    $region4: #{tpu_custom_call.1} parent=1 // pred_region
      _
    $region5: #{tpu_custom_call.1} parent=1 // pred_fallthru
      _
    // Predicated region
    $region6: #{tpu_custom_call.1} parent=1 // pred_check
      _
    $region7: #{tpu_custom_call.1} parent=1 // pred_check_branch
      %17 = sbr.rel (0) target = $region9
    $region8: #{tpu_custom_call.1} parent=1 // pred_region
      _
    $region9: #{tpu_custom_call.1} parent=1 // pred_fallthru
      _
    // Predicated region
    $region10: #{tpu_custom_call.1} parent=1 // pred_check
      _
    $region11: #{tpu_custom_call.1} parent=1 // pred_check_branch
      %19 = sbr.rel (0) target = $region13
    $region12: #{tpu_custom_call.1} parent=1 // pred_region
      %s21 = ssub.s32 512, 512
      %22 = vsyncadd [#allocation4], %s21
      %s23 = sshll.u32 [#allocation3], 4
      %s24 = int_to_ptr.vmem [resolvable:$true] %s23
      %29 = dma.hbm_to_vmem [thread:$0]  %s2, 512, %s24, [#allocation4], 128, 128, 8
    $region13: #{tpu_custom_call.1} parent=1 // pred_fallthru
      _
    // Predicated region
    $region14: #{tpu_custom_call.1} parent=1 // pred_check
      _
    $region15: #{tpu_custom_call.1} parent=1 // pred_check_branch
      %31 = sbr.rel (0) target = $region17
    $region16: #{tpu_custom_call.1} parent=1 // pred_region
      %s33 = ssub.s32 512, 512
      %34 = vsyncadd [#allocation7], %s33
      %s35 = sshll.u32 [#allocation6], 4
      %s36 = int_to_ptr.vmem [resolvable:$true] %s35
      %41 = dma.hbm_to_vmem [thread:$0]  %s3, 512, %s36, [#allocation7], 128, 128, 8
    $region17: #{tpu_custom_call.1} parent=1 // pred_fallthru
      _
    // Predicated region
    $region18: #{tpu_custom_call.1} parent=1 // pred_check
      _
    $region19: #{tpu_custom_call.1} parent=1 // pred_check_branch
      %43 = sbr.rel (0) target = $region21
    $region20: #{tpu_custom_call.1} parent=1 // pred_region
      _
    $region21: #{tpu_custom_call.1} parent=1 // pred_fallthru
      _
    // Predicated region
    $region22: #{tpu_custom_call.1} parent=1 // pred_check
      _
    $region23: #{tpu_custom_call.1} parent=1 // pred_check_branch
      %45 = sbr.rel (0) target = $region25
    $region24: #{tpu_custom_call.1} parent=1 // pred_region
      _
    $region25: #{tpu_custom_call.1} parent=1 // pred_fallthru
      _
    // Predicated region
    $region26: #{tpu_custom_call.1} parent=1 // pred_check
      _
    $region27: #{tpu_custom_call.1} parent=1 // pred_check_branch
      %47 = sbr.rel (0) target = $region29
    $region28: #{tpu_custom_call.1} parent=1 // pred_region
      %48 = dma.done [#allocation4], 512
    $region29: #{tpu_custom_call.1} parent=1 // pred_fallthru
      _
    // Predicated region
    $region30: #{tpu_custom_call.1} parent=1 // pred_check
      _
    $region31: #{tpu_custom_call.1} parent=1 // pred_check_branch
      %50 = sbr.rel (0) target = $region33
    $region32: #{tpu_custom_call.1} parent=1 // pred_region
      %51 = dma.done [#allocation7], 512
    $region33: #{tpu_custom_call.1} parent=1 // pred_fallthru
      _
    %v52 = vld [vmem:[%s0] sm:$0xff]
    %v53 = vld [vmem:[%s0 + $0x8] sm:$0xff]
    %v54 = vld [vmem:[%s0 + $0x10] sm:$0xff]
    %v55 = vld [vmem:[%s0 + $0x18] sm:$0xff]
    %v56 = vld [vmem:[%s1] sm:$0xff]
    %v57 = vld [vmem:[%s1 + $0x8] sm:$0xff]
    %v58 = vld [vmem:[%s1 + $0x10] sm:$0xff]
    %v59 = vld [vmem:[%s1 + $0x18] sm:$0xff]
    %vm60 = vcmask 130048
    %v62 = vsel %vm60, %v52, 0
    %v65 = vsel %vm60, %v53, 0
    %v68 = vsel %vm60, %v54, 0
    %v71 = vsel %vm60, %v55, 0
    %73 = vmatprep.subr.mxu0 0.0
    %74 = vmatpush1.msra.mxu0 0.0
    %75 = vmatprep.subr.mxu0 0.0
    %76 = vmatpush1.msra.mxu0 0.0
    %77 = vmatprep.subr.mxu0 0.0
    %78 = vmatpush1.msra.mxu0 0.0
    %79 = vmatprep.subr.mxu0 0.0
    %80 = vmatpush1.msra.mxu0 0.0
    %81 = vmatprep.subr.mxu0 0.0
    %82 = vmatpush1.msra.mxu0 0.0
    %83 = vmatprep.subr.mxu0 0.0
    %84 = vmatpush1.msra.mxu0 0.0
    %85 = vmatprep.subr.mxu0 0.0
    %86 = vmatpush1.msra.mxu0 0.0
    %87 = vmatprep.subr.mxu0 0.0
    %88 = vmatpush1.msra.mxu0 0.0
    %89 = vmatprep.subr.mxu0 0.0
    %90 = vmatpush1.msra.mxu0 0.0
    %91 = vmatprep.subr.mxu0 0.0
    %92 = vmatpush1.msra.mxu0 0.0
    %93 = vmatprep.subr.mxu0 0.0
    %94 = vmatpush1.msra.mxu0 0.0
    %95 = vmatprep.subr.mxu0 0.0
    %96 = vmatpush1.msra.mxu0 0.0
    %97 = vmatprep.subr.mxu0 0.0
    %98 = vmatpush1.msra.mxu0 0.0
    %99 = vmatprep.subr.mxu0 0.0
    %100 = vmatpush1.msra.mxu0 0.0
    %101 = vmatprep.subr.mxu0 %v59
    %102 = vmatpush1.msra.mxu0 %v58
    %103 = vmatprep.subr.mxu0 %v57
    %104 = vmatpush1.msra.mxu0 %v56
    %105 = vmatprep.subr.mxu0 0.0
    %106 = vmatpush2.msra.mxu0 0.0
    %107 = vmatprep.subr.mxu0 0.0
    %108 = vmatpush2.msra.mxu0 0.0
    %109 = vmatprep.subr.mxu0 0.0
    %110 = vmatpush2.msra.mxu0 0.0
    %111 = vmatprep.subr.mxu0 0.0
    %112 = vmatpush2.msra.mxu0 0.0
    %113 = vmatprep.subr.mxu0 0.0
    %114 = vmatpush2.msra.mxu0 0.0
    %115 = vmatprep.subr.mxu0 0.0
    %116 = vmatpush2.msra.mxu0 0.0
    %117 = vmatprep.subr.mxu0 0.0
    %118 = vmatpush2.msra.mxu0 0.0
    %119 = vmatprep.subr.mxu0 0.0
    %120 = vmatpush2.msra.mxu0 0.0
    %121 = vmatprep.subr.mxu0 0.0
    %122 = vmatpush2.msra.mxu0 0.0
    %123 = vmatprep.subr.mxu0 0.0
    %124 = vmatpush2.msra.mxu0 0.0
    %125 = vmatprep.subr.mxu0 0.0
    %126 = vmatpush2.msra.mxu0 0.0
    %127 = vmatprep.subr.mxu0 0.0
    %128 = vmatpush2.msra.mxu0 0.0
    %129 = vmatprep.subr.mxu0 0.0
    %130 = vmatpush2.msra.mxu0 0.0
    %131 = vmatprep.subr.mxu0 0.0
    %132 = vmatpush2.msra.mxu0 0.0
    %133 = vmatprep.subr.mxu0 0.0
    %134 = vmatpush2.msra.mxu0 0.0
    %135 = vmatprep.subr.mxu0 0.0
    %136 = vmatpush2.msra.mxu0 0.0
    %137 = vmatprep.mubr.f32.mxu0 0.0
    %138 = vmatmul.mubr.f32.gmra.mxu0 %v62
    %v139 = vpop.f32.mrf.mxu0
    %v140 = vadd.f32 0.0, %v139
    %v141 = vpop.f32.mrf.mxu0
    %v142 = vadd.f32 0.0, %v141
    %143 = vmatprep.mubr.f32.mxu0 0.0
    %144 = vmatmul.mubr.f32.gmra.mxu0 %v65
    %v145 = vpop.f32.mrf.mxu0
    %v146 = vadd.f32 0.0, %v145
    %v147 = vpop.f32.mrf.mxu0
    %v148 = vadd.f32 0.0, %v147
    %149 = vmatprep.mubr.f32.mxu0 0.0
    %150 = vmatmul.mubr.f32.gmra.mxu0 %v68
    %v151 = vpop.f32.mrf.mxu0
    %v152 = vadd.f32 0.0, %v151
    %v153 = vpop.f32.mrf.mxu0
    %v154 = vadd.f32 0.0, %v153
    %155 = vmatprep.mubr.f32.mxu0 0.0
    %156 = vmatmul.mubr.f32.gmra.mxu0 %v71
    %v157 = vpop.f32.mrf.mxu0
    %v158 = vadd.f32 0.0, %v157
    %v159 = vpop.f32.mrf.mxu0
    %v160 = vadd.f32 0.0, %v159
    %161 = vdwg.mxu0
    %162 = vst [vmem:[#allocation2] sm:$0xff] %v140
    %163 = vst [vmem:[#allocation2 + $0x8] sm:$0xff] %v142
    %164 = vst [vmem:[#allocation2 + $0x10] sm:$0xff] %v146
    %165 = vst [vmem:[#allocation2 + $0x18] sm:$0xff] %v148
    %166 = vst [vmem:[#allocation2 + $0x20] sm:$0xff] %v152
    %167 = vst [vmem:[#allocation2 + $0x28] sm:$0xff] %v154
    %168 = vst [vmem:[#allocation2 + $0x30] sm:$0xff] %v158
    %169 = vst [vmem:[#allocation2 + $0x38] sm:$0xff] %v160
    %v170 = vld [vmem:[#allocation3] sm:$0xff]
    %v171 = vld [vmem:[#allocation3 + $0x8] sm:$0xff]
    %v172 = vld [vmem:[#allocation3 + $0x10] sm:$0xff]
    %v173 = vld [vmem:[#allocation3 + $0x18] sm:$0xff]
    %v174 = vld [vmem:[%s4] sm:$0x1]
    %v175 = vld [vmem:[%s5] sm:$0x1]
    %v176 = vld [vmem:[#allocation2] sm:$0xf]
    %vm177 = vcmask 261120
    %v179 = vsel %vm177, 0.0, 0
    %181 = vmatprep.subr.mxu0 0.0
    %182 = vmatpush1.msra.mxu0 0.0
    %183 = vmatprep.subr.mxu0 0.0
    %184 = vmatpush1.msra.mxu0 0.0
    %185 = vmatprep.subr.mxu0 0.0
    %186 = vmatpush1.msra.mxu0 0.0
    %187 = vmatprep.subr.mxu0 0.0
    %188 = vmatpush1.msra.mxu0 0.0
    %189 = vmatprep.subr.mxu0 0.0
    %190 = vmatpush1.msra.mxu0 0.0
    %191 = vmatprep.subr.mxu0 0.0
    %192 = vmatpush1.msra.mxu0 0.0
    %193 = vmatprep.subr.mxu0 0.0
    %194 = vmatpush1.msra.mxu0 0.0
    %195 = vmatprep.subr.mxu0 0.0
    %196 = vmatpush1.msra.mxu0 0.0
    %197 = vmatprep.subr.mxu0 0.0
    %198 = vmatpush1.msra.mxu0 0.0
    %199 = vmatprep.subr.mxu0 0.0
    %200 = vmatpush1.msra.mxu0 0.0
    %201 = vmatprep.subr.mxu0 0.0
    %202 = vmatpush1.msra.mxu0 0.0
    %203 = vmatprep.subr.mxu0 0.0
    %204 = vmatpush1.msra.mxu0 0.0
    %205 = vmatprep.subr.mxu0 0.0
    %206 = vmatpush1.msra.mxu0 %v173
    %207 = vmatprep.subr.mxu0 0.0
    %208 = vmatpush1.msra.mxu0 %v172
    %209 = vmatprep.subr.mxu0 0.0
    %210 = vmatpush1.msra.mxu0 %v171
    %211 = vmatprep.subr.mxu0 0.0
    %212 = vmatpush1.msra.mxu0 %v170
    %213 = vmatprep.subr.mxu0 0.0
    %214 = vmatpush2.msra.mxu0 0.0
    %215 = vmatprep.subr.mxu0 0.0
    %216 = vmatpush2.msra.mxu0 0.0
    %217 = vmatprep.subr.mxu0 0.0
    %218 = vmatpush2.msra.mxu0 0.0
    %219 = vmatprep.subr.mxu0 0.0
    %220 = vmatpush2.msra.mxu0 0.0
    %221 = vmatprep.subr.mxu0 0.0
    %222 = vmatpush2.msra.mxu0 0.0
    %223 = vmatprep.subr.mxu0 0.0
    %224 = vmatpush2.msra.mxu0 0.0
    %225 = vmatprep.subr.mxu0 0.0
    %226 = vmatpush2.msra.mxu0 0.0
    %227 = vmatprep.subr.mxu0 0.0
    %228 = vmatpush2.msra.mxu0 0.0
    %229 = vmatprep.subr.mxu0 0.0
    %230 = vmatpush2.msra.mxu0 0.0
    %231 = vmatprep.subr.mxu0 0.0
    %232 = vmatpush2.msra.mxu0 0.0
    %233 = vmatprep.subr.mxu0 0.0
    %234 = vmatpush2.msra.mxu0 0.0
    %235 = vmatprep.subr.mxu0 0.0
    %236 = vmatpush2.msra.mxu0 0.0
    %237 = vmatprep.subr.mxu0 0.0
    %238 = vmatpush2.msra.mxu0 0.0
    %239 = vmatprep.subr.mxu0 0.0
    %240 = vmatpush2.msra.mxu0 0.0
    %241 = vmatprep.subr.mxu0 0.0
    %242 = vmatpush2.msra.mxu0 0.0
    %243 = vmatprep.subr.mxu0 0.0
    %244 = vmatpush2.msra.mxu0 0.0
    %245 = vmatprep.mubr.f32.mxu0 0.0
    %246 = vmatmul.mubr.f32.gmra.mxu0 %v179
    %v247 = vpop.f32.mrf.mxu0
    %v248 = vadd.f32 0.0, %v247
    %v249 = vpop.f32.mrf.mxu0
    %250 = vdwg.mxu0
    %v251 = vadd.f32 %v176, %v248
    %v253 = vlaneseq
    %v254 = vshrl.u32 %v253, 7
    %v255 = vsub.s32 0, %v254
    %v256 = vrot.slane %v174, %v255
    %v258 = vadd.f32 %v251, %v256
    %v259 = vxor.u32 %v258, 2147483648
    %v260 = vmul.f32 %v259, 1.442695
    %v261 = vpow.pop %v260
    %v262 = vadd.f32 %v261, 1.0
    %v263 = vrcp.pop %v262
    %v264 = vmul.f32 1.0, %v263
    %v265 = vtanh.pop %v258
    %v266 = vmul.f32 %v264, 0.0
    %268 = vrot.lane.b32.xlu0 %v265, 64
    %v269 = vpop.permute.xlu0 %268
    %v271 = vmul.f32 %v264, %v269
    %273 = vrot.lane.b32.xlu0 %v271, 32
    %v274 = vpop.permute.xlu0 %273
    %v276 = vadd.f32 %v266, %v274
    %v277 = vtanh.pop %v276
    %279 = vrot.lane.b32.xlu0 %v277, 64
    %v280 = vpop.permute.xlu0 %279
    %v282 = vmul.f32 %v264, %v280
    %284 = vrot.lane.b32.xlu0 %v282, 32
    %v285 = vpop.permute.xlu0 %284
    %vm287 = vcmask 257024
    %288 = vst.msk [vmem:[#allocation8] sm:$0xf] %vm287, %v285
    %v289 = vld [vmem:[#allocation2] sm:$0xf0]
    %v290 = vsel %vm177, %v285, 0
    %292 = vmatprep.subr.mxu0 0.0
    %293 = vmatpush1.msra.mxu0 0.0
    %294 = vmatprep.subr.mxu0 0.0
    %295 = vmatpush1.msra.mxu0 0.0
    %296 = vmatprep.subr.mxu0 0.0
    %297 = vmatpush1.msra.mxu0 0.0
    %298 = vmatprep.subr.mxu0 0.0
    %299 = vmatpush1.msra.mxu0 0.0
    %300 = vmatprep.subr.mxu0 0.0
    %301 = vmatpush1.msra.mxu0 0.0
    %302 = vmatprep.subr.mxu0 0.0
    %303 = vmatpush1.msra.mxu0 0.0
    %304 = vmatprep.subr.mxu0 0.0
    %305 = vmatpush1.msra.mxu0 0.0
    %306 = vmatprep.subr.mxu0 0.0
    %307 = vmatpush1.msra.mxu0 0.0
    %308 = vmatprep.subr.mxu0 0.0
    %309 = vmatpush1.msra.mxu0 0.0
    %310 = vmatprep.subr.mxu0 0.0
    %311 = vmatpush1.msra.mxu0 0.0
    %312 = vmatprep.subr.mxu0 0.0
    %313 = vmatpush1.msra.mxu0 0.0
    %314 = vmatprep.subr.mxu0 0.0
    %315 = vmatpush1.msra.mxu0 0.0
    %316 = vmatprep.subr.mxu0 0.0
    %317 = vmatpush1.msra.mxu0 %v173
    %318 = vmatprep.subr.mxu0 0.0
    %319 = vmatpush1.msra.mxu0 %v172
    %320 = vmatprep.subr.mxu0 0.0
    %321 = vmatpush1.msra.mxu0 %v171
    %322 = vmatprep.subr.mxu0 0.0
    %323 = vmatpush1.msra.mxu0 %v170
    %324 = vmatprep.subr.mxu0 0.0
    %325 = vmatpush2.msra.mxu0 0.0
    %326 = vmatprep.subr.mxu0 0.0
    %327 = vmatpush2.msra.mxu0 0.0
    %328 = vmatprep.subr.mxu0 0.0
    %329 = vmatpush2.msra.mxu0 0.0
    %330 = vmatprep.subr.mxu0 0.0
    %331 = vmatpush2.msra.mxu0 0.0
    %332 = vmatprep.subr.mxu0 0.0
    %333 = vmatpush2.msra.mxu0 0.0
    %334 = vmatprep.subr.mxu0 0.0
    %335 = vmatpush2.msra.mxu0 0.0
    %336 = vmatprep.subr.mxu0 0.0
    %337 = vmatpush2.msra.mxu0 0.0
    %338 = vmatprep.subr.mxu0 0.0
    %339 = vmatpush2.msra.mxu0 0.0
    %340 = vmatprep.subr.mxu0 0.0
    %341 = vmatpush2.msra.mxu0 0.0
    %342 = vmatprep.subr.mxu0 0.0
    %343 = vmatpush2.msra.mxu0 0.0
    %344 = vmatprep.subr.mxu0 0.0
    %345 = vmatpush2.msra.mxu0 0.0
    %346 = vmatprep.subr.mxu0 0.0
    %347 = vmatpush2.msra.mxu0 0.0
    %348 = vmatprep.subr.mxu0 0.0
    %349 = vmatpush2.msra.mxu0 0.0
    %350 = vmatprep.subr.mxu0 0.0
    %351 = vmatpush2.msra.mxu0 0.0
    %352 = vmatprep.subr.mxu0 0.0
    %353 = vmatpush2.msra.mxu0 0.0
    %354 = vmatprep.subr.mxu0 0.0
    %355 = vmatpush2.msra.mxu0 0.0
    %356 = vmatprep.mubr.f32.mxu0 0.0
    %357 = vmatmul.mubr.f32.gmra.mxu0 %v290
    %v358 = vpop.f32.mrf.mxu0
    %v359 = vadd.f32 0.0, %v358
    %v360 = vpop.f32.mrf.mxu0
    %361 = vdwg.mxu0
    %v363 = vrot.slane %v359, 4
    %v365 = vadd.f32 %v289, %v363
    %v366 = vadd.f32 %v365, %v256
    %v367 = vxor.u32 %v366, 2147483648
    %v368 = vmul.f32 %v367, 1.442695
    %v369 = vpow.pop %v368
    %v370 = vadd.f32 %v369, 1.0
    %v371 = vrcp.pop %v370
    %v372 = vmul.f32 1.0, %v371
    %v373 = vtanh.pop %v366
    %v375 = vrot.slane %v276, 4
    %v377 = vmul.f32 %v372, %v375
    %379 = vrot.lane.b32.xlu0 %v373, 64
    %v380 = vpop.permute.xlu0 %379
    %v382 = vmul.f32 %v372, %v380
    %384 = vrot.lane.b32.xlu0 %v382, 32
    %v385 = vpop.permute.xlu0 %384
    %v387 = vadd.f32 %v377, %v385
    %v388 = vtanh.pop %v387
    %390 = vrot.lane.b32.xlu0 %v388, 64
    %v391 = vpop.permute.xlu0 %390
    %v393 = vmul.f32 %v372, %v391
    %395 = vrot.lane.b32.xlu0 %v393, 32
    %v396 = vpop.permute.xlu0 %395
    %vm398 = vcmask 261124
    %399 = vst.msk [vmem:[#allocation8] sm:$0xf0] %vm398, %v396
    %v400 = vld [vmem:[#allocation2 + $0x10] sm:$0xf]
    %v401 = vrot.slane %v393, 4
    %402 = vrot.lane.b32.xlu0 %v401, 32
    %v403 = vpop.permute.xlu0 %402
    %v404 = vsel %vm177, %v403, 0
    %406 = vmatprep.subr.mxu0 0.0
    %407 = vmatpush1.msra.mxu0 0.0
    %408 = vmatprep.subr.mxu0 0.0
    %409 = vmatpush1.msra.mxu0 0.0
    %410 = vmatprep.subr.mxu0 0.0
    %411 = vmatpush1.msra.mxu0 0.0
    %412 = vmatprep.subr.mxu0 0.0
    %413 = vmatpush1.msra.mxu0 0.0
    %414 = vmatprep.subr.mxu0 0.0
    %415 = vmatpush1.msra.mxu0 0.0
    %416 = vmatprep.subr.mxu0 0.0
    %417 = vmatpush1.msra.mxu0 0.0
    %418 = vmatprep.subr.mxu0 0.0
    %419 = vmatpush1.msra.mxu0 0.0
    %420 = vmatprep.subr.mxu0 0.0
    %421 = vmatpush1.msra.mxu0 0.0
    %422 = vmatprep.subr.mxu0 0.0
    %423 = vmatpush1.msra.mxu0 0.0
    %424 = vmatprep.subr.mxu0 0.0
    %425 = vmatpush1.msra.mxu0 0.0
    %426 = vmatprep.subr.mxu0 0.0
    %427 = vmatpush1.msra.mxu0 0.0
    %428 = vmatprep.subr.mxu0 0.0
    %429 = vmatpush1.msra.mxu0 0.0
    %430 = vmatprep.subr.mxu0 0.0
    %431 = vmatpush1.msra.mxu0 %v173
    %432 = vmatprep.subr.mxu0 0.0
    %433 = vmatpush1.msra.mxu0 %v172
    %434 = vmatprep.subr.mxu0 0.0
    %435 = vmatpush1.msra.mxu0 %v171
    %436 = vmatprep.subr.mxu0 0.0
    %437 = vmatpush1.msra.mxu0 %v170
    %438 = vmatprep.subr.mxu0 0.0
    %439 = vmatpush2.msra.mxu0 0.0
    %440 = vmatprep.subr.mxu0 0.0
    %441 = vmatpush2.msra.mxu0 0.0
    %442 = vmatprep.subr.mxu0 0.0
    %443 = vmatpush2.msra.mxu0 0.0
    %444 = vmatprep.subr.mxu0 0.0
    %445 = vmatpush2.msra.mxu0 0.0
    %446 = vmatprep.subr.mxu0 0.0
    %447 = vmatpush2.msra.mxu0 0.0
    %448 = vmatprep.subr.mxu0 0.0
    %449 = vmatpush2.msra.mxu0 0.0
    %450 = vmatprep.subr.mxu0 0.0
    %451 = vmatpush2.msra.mxu0 0.0
    %452 = vmatprep.subr.mxu0 0.0
    %453 = vmatpush2.msra.mxu0 0.0
    %454 = vmatprep.subr.mxu0 0.0
    %455 = vmatpush2.msra.mxu0 0.0
    %456 = vmatprep.subr.mxu0 0.0
    %457 = vmatpush2.msra.mxu0 0.0
    %458 = vmatprep.subr.mxu0 0.0
    %459 = vmatpush2.msra.mxu0 0.0
    %460 = vmatprep.subr.mxu0 0.0
    %461 = vmatpush2.msra.mxu0 0.0
    %462 = vmatprep.subr.mxu0 0.0
    %463 = vmatpush2.msra.mxu0 0.0
    %464 = vmatprep.subr.mxu0 0.0
    %465 = vmatpush2.msra.mxu0 0.0
    %466 = vmatprep.subr.mxu0 0.0
    %467 = vmatpush2.msra.mxu0 0.0
    %468 = vmatprep.subr.mxu0 0.0
    %469 = vmatpush2.msra.mxu0 0.0
    %470 = vmatprep.mubr.f32.mxu0 0.0
    %471 = vmatmul.mubr.f32.gmra.mxu0 %v404
    %v472 = vpop.f32.mrf.mxu0
    %v473 = vadd.f32 0.0, %v472
    %v474 = vpop.f32.mrf.mxu0
    %475 = vdwg.mxu0
    %v476 = vadd.f32 %v400, %v473
    %v477 = vadd.f32 %v476, %v256
    %v478 = vxor.u32 %v477, 2147483648
    %v479 = vmul.f32 %v478, 1.442695
    %v480 = vpow.pop %v479
    %v481 = vadd.f32 %v480, 1.0
    %v482 = vrcp.pop %v481
    %v483 = vmul.f32 1.0, %v482
    %v484 = vtanh.pop %v477
    %v486 = vrot.slane %v387, 4
    %v488 = vmul.f32 %v483, %v486
    %490 = vrot.lane.b32.xlu0 %v484, 64
    %v491 = vpop.permute.xlu0 %490
    %v493 = vmul.f32 %v483, %v491
    %495 = vrot.lane.b32.xlu0 %v493, 32
    %v496 = vpop.permute.xlu0 %495
    %v498 = vadd.f32 %v488, %v496
    %v499 = vtanh.pop %v498
    %501 = vrot.lane.b32.xlu0 %v499, 64
    %v502 = vpop.permute.xlu0 %501
    %v504 = vmul.f32 %v483, %v502
    %506 = vrot.lane.b32.xlu0 %v504, 32
    %v507 = vpop.permute.xlu0 %506
    %509 = vst.msk [vmem:[#allocation8 + $0x8] sm:$0xf] %vm287, %v507
    %v510 = vld [vmem:[#allocation2 + $0x10] sm:$0xf0]
    %v511 = vsel %vm177, %v507, 0
    %513 = vmatprep.subr.mxu0 0.0
    %514 = vmatpush1.msra.mxu0 0.0
    %515 = vmatprep.subr.mxu0 0.0
    %516 = vmatpush1.msra.mxu0 0.0
    %517 = vmatprep.subr.mxu0 0.0
    %518 = vmatpush1.msra.mxu0 0.0
    %519 = vmatprep.subr.mxu0 0.0
    %520 = vmatpush1.msra.mxu0 0.0
    %521 = vmatprep.subr.mxu0 0.0
    %522 = vmatpush1.msra.mxu0 0.0
    %523 = vmatprep.subr.mxu0 0.0
    %524 = vmatpush1.msra.mxu0 0.0
    %525 = vmatprep.subr.mxu0 0.0
    %526 = vmatpush1.msra.mxu0 0.0
    %527 = vmatprep.subr.mxu0 0.0
    %528 = vmatpush1.msra.mxu0 0.0
    %529 = vmatprep.subr.mxu0 0.0
    %530 = vmatpush1.msra.mxu0 0.0
    %531 = vmatprep.subr.mxu0 0.0
    %532 = vmatpush1.msra.mxu0 0.0
    %533 = vmatprep.subr.mxu0 0.0
    %534 = vmatpush1.msra.mxu0 0.0
    %535 = vmatprep.subr.mxu0 0.0
    %536 = vmatpush1.msra.mxu0 0.0
    %537 = vmatprep.subr.mxu0 0.0
    %538 = vmatpush1.msra.mxu0 %v173
    %539 = vmatprep.subr.mxu0 0.0
    %540 = vmatpush1.msra.mxu0 %v172
    %541 = vmatprep.subr.mxu0 0.0
    %542 = vmatpush1.msra.mxu0 %v171
    %543 = vmatprep.subr.mxu0 0.0
    %544 = vmatpush1.msra.mxu0 %v170
    %545 = vmatprep.subr.mxu0 0.0
    %546 = vmatpush2.msra.mxu0 0.0
    %547 = vmatprep.subr.mxu0 0.0
    %548 = vmatpush2.msra.mxu0 0.0
    %549 = vmatprep.subr.mxu0 0.0
    %550 = vmatpush2.msra.mxu0 0.0
    %551 = vmatprep.subr.mxu0 0.0
    %552 = vmatpush2.msra.mxu0 0.0
    %553 = vmatprep.subr.mxu0 0.0
    %554 = vmatpush2.msra.mxu0 0.0
    %555 = vmatprep.subr.mxu0 0.0
    %556 = vmatpush2.msra.mxu0 0.0
    %557 = vmatprep.subr.mxu0 0.0
    %558 = vmatpush2.msra.mxu0 0.0
    %559 = vmatprep.subr.mxu0 0.0
    %560 = vmatpush2.msra.mxu0 0.0
    %561 = vmatprep.subr.mxu0 0.0
    %562 = vmatpush2.msra.mxu0 0.0
    %563 = vmatprep.subr.mxu0 0.0
    %564 = vmatpush2.msra.mxu0 0.0
    %565 = vmatprep.subr.mxu0 0.0
    %566 = vmatpush2.msra.mxu0 0.0
    %567 = vmatprep.subr.mxu0 0.0
    %568 = vmatpush2.msra.mxu0 0.0
    %569 = vmatprep.subr.mxu0 0.0
    %570 = vmatpush2.msra.mxu0 0.0
    %571 = vmatprep.subr.mxu0 0.0
    %572 = vmatpush2.msra.mxu0 0.0
    %573 = vmatprep.subr.mxu0 0.0
    %574 = vmatpush2.msra.mxu0 0.0
    %575 = vmatprep.subr.mxu0 0.0
    %576 = vmatpush2.msra.mxu0 0.0
    %577 = vmatprep.mubr.f32.mxu0 0.0
    %578 = vmatmul.mubr.f32.gmra.mxu0 %v511
    %v579 = vpop.f32.mrf.mxu0
    %v580 = vadd.f32 0.0, %v579
    %v581 = vpop.f32.mrf.mxu0
    %582 = vdwg.mxu0
    %v584 = vrot.slane %v580, 4
    %v586 = vadd.f32 %v510, %v584
    %v587 = vadd.f32 %v586, %v256
    %v588 = vxor.u32 %v587, 2147483648
    %v589 = vmul.f32 %v588, 1.442695
    %v590 = vpow.pop %v589
    %v591 = vadd.f32 %v590, 1.0
    %v592 = vrcp.pop %v591
    %v593 = vmul.f32 1.0, %v592
    %v594 = vtanh.pop %v587
    %v596 = vrot.slane %v498, 4
    %v598 = vmul.f32 %v593, %v596
    %600 = vrot.lane.b32.xlu0 %v594, 64
    %v601 = vpop.permute.xlu0 %600
    %v603 = vmul.f32 %v593, %v601
    %605 = vrot.lane.b32.xlu0 %v603, 32
    %v606 = vpop.permute.xlu0 %605
    %v608 = vadd.f32 %v598, %v606
    %v609 = vtanh.pop %v608
    %611 = vrot.lane.b32.xlu0 %v609, 64
    %v612 = vpop.permute.xlu0 %611
    %v614 = vmul.f32 %v593, %v612
    %616 = vrot.lane.b32.xlu0 %v614, 32
    %v617 = vpop.permute.xlu0 %616
    %619 = vst.msk [vmem:[#allocation8 + $0x8] sm:$0xf0] %vm398, %v617
    %v620 = vld [vmem:[#allocation2 + $0x20] sm:$0xf]
    %v621 = vrot.slane %v614, 4
    %622 = vrot.lane.b32.xlu0 %v621, 32
    %v623 = vpop.permute.xlu0 %622
    %v624 = vsel %vm177, %v623, 0
    %626 = vmatprep.subr.mxu0 0.0
    %627 = vmatpush1.msra.mxu0 0.0
    %628 = vmatprep.subr.mxu0 0.0
    %629 = vmatpush1.msra.mxu0 0.0
    %630 = vmatprep.subr.mxu0 0.0
    %631 = vmatpush1.msra.mxu0 0.0
    %632 = vmatprep.subr.mxu0 0.0
    %633 = vmatpush1.msra.mxu0 0.0
    %634 = vmatprep.subr.mxu0 0.0
    %635 = vmatpush1.msra.mxu0 0.0
    %636 = vmatprep.subr.mxu0 0.0
    %637 = vmatpush1.msra.mxu0 0.0
    %638 = vmatprep.subr.mxu0 0.0
    %639 = vmatpush1.msra.mxu0 0.0
    %640 = vmatprep.subr.mxu0 0.0
    %641 = vmatpush1.msra.mxu0 0.0
    %642 = vmatprep.subr.mxu0 0.0
    %643 = vmatpush1.msra.mxu0 0.0
    %644 = vmatprep.subr.mxu0 0.0
    %645 = vmatpush1.msra.mxu0 0.0
    %646 = vmatprep.subr.mxu0 0.0
    %647 = vmatpush1.msra.mxu0 0.0
    %648 = vmatprep.subr.mxu0 0.0
    %649 = vmatpush1.msra.mxu0 0.0
    %650 = vmatprep.subr.mxu0 0.0
    %651 = vmatpush1.msra.mxu0 %v173
    %652 = vmatprep.subr.mxu0 0.0
    %653 = vmatpush1.msra.mxu0 %v172
    %654 = vmatprep.subr.mxu0 0.0
    %655 = vmatpush1.msra.mxu0 %v171
    %656 = vmatprep.subr.mxu0 0.0
    %657 = vmatpush1.msra.mxu0 %v170
    %658 = vmatprep.subr.mxu0 0.0
    %659 = vmatpush2.msra.mxu0 0.0
    %660 = vmatprep.subr.mxu0 0.0
    %661 = vmatpush2.msra.mxu0 0.0
    %662 = vmatprep.subr.mxu0 0.0
    %663 = vmatpush2.msra.mxu0 0.0
    %664 = vmatprep.subr.mxu0 0.0
    %665 = vmatpush2.msra.mxu0 0.0
    %666 = vmatprep.subr.mxu0 0.0
    %667 = vmatpush2.msra.mxu0 0.0
    %668 = vmatprep.subr.mxu0 0.0
    %669 = vmatpush2.msra.mxu0 0.0
    %670 = vmatprep.subr.mxu0 0.0
    %671 = vmatpush2.msra.mxu0 0.0
    %672 = vmatprep.subr.mxu0 0.0
    %673 = vmatpush2.msra.mxu0 0.0
    %674 = vmatprep.subr.mxu0 0.0
    %675 = vmatpush2.msra.mxu0 0.0
    %676 = vmatprep.subr.mxu0 0.0
    %677 = vmatpush2.msra.mxu0 0.0
    %678 = vmatprep.subr.mxu0 0.0
    %679 = vmatpush2.msra.mxu0 0.0
    %680 = vmatprep.subr.mxu0 0.0
    %681 = vmatpush2.msra.mxu0 0.0
    %682 = vmatprep.subr.mxu0 0.0
    %683 = vmatpush2.msra.mxu0 0.0
    %684 = vmatprep.subr.mxu0 0.0
    %685 = vmatpush2.msra.mxu0 0.0
    %686 = vmatprep.subr.mxu0 0.0
    %687 = vmatpush2.msra.mxu0 0.0
    %688 = vmatprep.subr.mxu0 0.0
    %689 = vmatpush2.msra.mxu0 0.0
    %690 = vmatprep.mubr.f32.mxu0 0.0
    %691 = vmatmul.mubr.f32.gmra.mxu0 %v624
    %v692 = vpop.f32.mrf.mxu0
    %v693 = vadd.f32 0.0, %v692
    %v694 = vpop.f32.mrf.mxu0
    %695 = vdwg.mxu0
    %v696 = vadd.f32 %v620, %v693
    %v697 = vadd.f32 %v696, %v256
    %v698 = vxor.u32 %v697, 2147483648
    %v699 = vmul.f32 %v698, 1.442695
    %v700 = vpow.pop %v699
    %v701 = vadd.f32 %v700, 1.0
    %v702 = vrcp.pop %v701
    %v703 = vmul.f32 1.0, %v702
    %v704 = vtanh.pop %v697
    %v706 = vrot.slane %v608, 4
    %v708 = vmul.f32 %v703, %v706
    %710 = vrot.lane.b32.xlu0 %v704, 64
    %v711 = vpop.permute.xlu0 %710
    %v713 = vmul.f32 %v703, %v711
    %715 = vrot.lane.b32.xlu0 %v713, 32
    %v716 = vpop.permute.xlu0 %715
    %v718 = vadd.f32 %v708, %v716
    %v719 = vtanh.pop %v718
    %721 = vrot.lane.b32.xlu0 %v719, 64
    %v722 = vpop.permute.xlu0 %721
    %v724 = vmul.f32 %v703, %v722
    %726 = vrot.lane.b32.xlu0 %v724, 32
    %v727 = vpop.permute.xlu0 %726
    %729 = vst.msk [vmem:[#allocation8 + $0x10] sm:$0xf] %vm287, %v727
    %v730 = vld [vmem:[#allocation2 + $0x20] sm:$0xf0]
    %v731 = vsel %vm177, %v727, 0
    %733 = vmatprep.subr.mxu0 0.0
    %734 = vmatpush1.msra.mxu0 0.0
    %735 = vmatprep.subr.mxu0 0.0
    %736 = vmatpush1.msra.mxu0 0.0
    %737 = vmatprep.subr.mxu0 0.0
    %738 = vmatpush1.msra.mxu0 0.0
    %739 = vmatprep.subr.mxu0 0.0
    %740 = vmatpush1.msra.mxu0 0.0
    %741 = vmatprep.subr.mxu0 0.0
    %742 = vmatpush1.msra.mxu0 0.0
    %743 = vmatprep.subr.mxu0 0.0
    %744 = vmatpush1.msra.mxu0 0.0
    %745 = vmatprep.subr.mxu0 0.0
    %746 = vmatpush1.msra.mxu0 0.0
    %747 = vmatprep.subr.mxu0 0.0
    %748 = vmatpush1.msra.mxu0 0.0
    %749 = vmatprep.subr.mxu0 0.0
    %750 = vmatpush1.msra.mxu0 0.0
    %751 = vmatprep.subr.mxu0 0.0
    %752 = vmatpush1.msra.mxu0 0.0
    %753 = vmatprep.subr.mxu0 0.0
    %754 = vmatpush1.msra.mxu0 0.0
    %755 = vmatprep.subr.mxu0 0.0
    %756 = vmatpush1.msra.mxu0 0.0
    %757 = vmatprep.subr.mxu0 0.0
    %758 = vmatpush1.msra.mxu0 %v173
    %759 = vmatprep.subr.mxu0 0.0
    %760 = vmatpush1.msra.mxu0 %v172
    %761 = vmatprep.subr.mxu0 0.0
    %762 = vmatpush1.msra.mxu0 %v171
    %763 = vmatprep.subr.mxu0 0.0
    %764 = vmatpush1.msra.mxu0 %v170
    %765 = vmatprep.subr.mxu0 0.0
    %766 = vmatpush2.msra.mxu0 0.0
    %767 = vmatprep.subr.mxu0 0.0
    %768 = vmatpush2.msra.mxu0 0.0
    %769 = vmatprep.subr.mxu0 0.0
    %770 = vmatpush2.msra.mxu0 0.0
    %771 = vmatprep.subr.mxu0 0.0
    %772 = vmatpush2.msra.mxu0 0.0
    %773 = vmatprep.subr.mxu0 0.0
    %774 = vmatpush2.msra.mxu0 0.0
    %775 = vmatprep.subr.mxu0 0.0
    %776 = vmatpush2.msra.mxu0 0.0
    %777 = vmatprep.subr.mxu0 0.0
    %778 = vmatpush2.msra.mxu0 0.0
    %779 = vmatprep.subr.mxu0 0.0
    %780 = vmatpush2.msra.mxu0 0.0
    %781 = vmatprep.subr.mxu0 0.0
    %782 = vmatpush2.msra.mxu0 0.0
    %783 = vmatprep.subr.mxu0 0.0
    %784 = vmatpush2.msra.mxu0 0.0
    %785 = vmatprep.subr.mxu0 0.0
    %786 = vmatpush2.msra.mxu0 0.0
    %787 = vmatprep.subr.mxu0 0.0
    %788 = vmatpush2.msra.mxu0 0.0
    %789 = vmatprep.subr.mxu0 0.0
    %790 = vmatpush2.msra.mxu0 0.0
    %791 = vmatprep.subr.mxu0 0.0
    %792 = vmatpush2.msra.mxu0 0.0
    %793 = vmatprep.subr.mxu0 0.0
    %794 = vmatpush2.msra.mxu0 0.0
    %795 = vmatprep.subr.mxu0 0.0
    %796 = vmatpush2.msra.mxu0 0.0
    %797 = vmatprep.mubr.f32.mxu0 0.0
    %798 = vmatmul.mubr.f32.gmra.mxu0 %v731
    %v799 = vpop.f32.mrf.mxu0
    %v800 = vadd.f32 0.0, %v799
    %v801 = vpop.f32.mrf.mxu0
    %802 = vdwg.mxu0
    %v804 = vrot.slane %v800, 4
    %v806 = vadd.f32 %v730, %v804
    %v807 = vadd.f32 %v806, %v256
    %v808 = vxor.u32 %v807, 2147483648
    %v809 = vmul.f32 %v808, 1.442695
    %v810 = vpow.pop %v809
    %v811 = vadd.f32 %v810, 1.0
    %v812 = vrcp.pop %v811
    %v813 = vmul.f32 1.0, %v812
    %v814 = vtanh.pop %v807
    %v816 = vrot.slane %v718, 4
    %v818 = vmul.f32 %v813, %v816
    %820 = vrot.lane.b32.xlu0 %v814, 64
    %v821 = vpop.permute.xlu0 %820
    %v823 = vmul.f32 %v813, %v821
    %825 = vrot.lane.b32.xlu0 %v823, 32
    %v826 = vpop.permute.xlu0 %825
    %v828 = vadd.f32 %v818, %v826
    %v829 = vtanh.pop %v828
    %831 = vrot.lane.b32.xlu0 %v829, 64
    %v832 = vpop.permute.xlu0 %831
    %v834 = vmul.f32 %v813, %v832
    %836 = vrot.lane.b32.xlu0 %v834, 32
    %v837 = vpop.permute.xlu0 %836
    %839 = vst.msk [vmem:[#allocation8 + $0x10] sm:$0xf0] %vm398, %v837
    %v840 = vld [vmem:[#allocation2 + $0x30] sm:$0xf]
    %v841 = vrot.slane %v834, 4
    %842 = vrot.lane.b32.xlu0 %v841, 32
    %v843 = vpop.permute.xlu0 %842
    %v844 = vsel %vm177, %v843, 0
    %846 = vmatprep.subr.mxu0 0.0
    %847 = vmatpush1.msra.mxu0 0.0
    %848 = vmatprep.subr.mxu0 0.0
    %849 = vmatpush1.msra.mxu0 0.0
    %850 = vmatprep.subr.mxu0 0.0
    %851 = vmatpush1.msra.mxu0 0.0
    %852 = vmatprep.subr.mxu0 0.0
    %853 = vmatpush1.msra.mxu0 0.0
    %854 = vmatprep.subr.mxu0 0.0
    %855 = vmatpush1.msra.mxu0 0.0
    %856 = vmatprep.subr.mxu0 0.0
    %857 = vmatpush1.msra.mxu0 0.0
    %858 = vmatprep.subr.mxu0 0.0
    %859 = vmatpush1.msra.mxu0 0.0
    %860 = vmatprep.subr.mxu0 0.0
    %861 = vmatpush1.msra.mxu0 0.0
    %862 = vmatprep.subr.mxu0 0.0
    %863 = vmatpush1.msra.mxu0 0.0
    %864 = vmatprep.subr.mxu0 0.0
    %865 = vmatpush1.msra.mxu0 0.0
    %866 = vmatprep.subr.mxu0 0.0
    %867 = vmatpush1.msra.mxu0 0.0
    %868 = vmatprep.subr.mxu0 0.0
    %869 = vmatpush1.msra.mxu0 0.0
    %870 = vmatprep.subr.mxu0 0.0
    %871 = vmatpush1.msra.mxu0 %v173
    %872 = vmatprep.subr.mxu0 0.0
    %873 = vmatpush1.msra.mxu0 %v172
    %874 = vmatprep.subr.mxu0 0.0
    %875 = vmatpush1.msra.mxu0 %v171
    %876 = vmatprep.subr.mxu0 0.0
    %877 = vmatpush1.msra.mxu0 %v170
    %878 = vmatprep.subr.mxu0 0.0
    %879 = vmatpush2.msra.mxu0 0.0
    %880 = vmatprep.subr.mxu0 0.0
    %881 = vmatpush2.msra.mxu0 0.0
    %882 = vmatprep.subr.mxu0 0.0
    %883 = vmatpush2.msra.mxu0 0.0
    %884 = vmatprep.subr.mxu0 0.0
    %885 = vmatpush2.msra.mxu0 0.0
    %886 = vmatprep.subr.mxu0 0.0
    %887 = vmatpush2.msra.mxu0 0.0
    %888 = vmatprep.subr.mxu0 0.0
    %889 = vmatpush2.msra.mxu0 0.0
    %890 = vmatprep.subr.mxu0 0.0
    %891 = vmatpush2.msra.mxu0 0.0
    %892 = vmatprep.subr.mxu0 0.0
    %893 = vmatpush2.msra.mxu0 0.0
    %894 = vmatprep.subr.mxu0 0.0
    %895 = vmatpush2.msra.mxu0 0.0
    %896 = vmatprep.subr.mxu0 0.0
    %897 = vmatpush2.msra.mxu0 0.0
    %898 = vmatprep.subr.mxu0 0.0
    %899 = vmatpush2.msra.mxu0 0.0
    %900 = vmatprep.subr.mxu0 0.0
    %901 = vmatpush2.msra.mxu0 0.0
    %902 = vmatprep.subr.mxu0 0.0
    %903 = vmatpush2.msra.mxu0 0.0
    %904 = vmatprep.subr.mxu0 0.0
    %905 = vmatpush2.msra.mxu0 0.0
    %906 = vmatprep.subr.mxu0 0.0
    %907 = vmatpush2.msra.mxu0 0.0
    %908 = vmatprep.subr.mxu0 0.0
    %909 = vmatpush2.msra.mxu0 0.0
    %910 = vmatprep.mubr.f32.mxu0 0.0
    %911 = vmatmul.mubr.f32.gmra.mxu0 %v844
    %v912 = vpop.f32.mrf.mxu0
    %v913 = vadd.f32 0.0, %v912
    %v914 = vpop.f32.mrf.mxu0
    %915 = vdwg.mxu0
    %v916 = vadd.f32 %v840, %v913
    %v917 = vadd.f32 %v916, %v256
    %v918 = vxor.u32 %v917, 2147483648
    %v919 = vmul.f32 %v918, 1.442695
    %v920 = vpow.pop %v919
    %v921 = vadd.f32 %v920, 1.0
    %v922 = vrcp.pop %v921
    %v923 = vmul.f32 1.0, %v922
    %v924 = vtanh.pop %v917
    %v926 = vrot.slane %v828, 4
    %v928 = vmul.f32 %v923, %v926
    %930 = vrot.lane.b32.xlu0 %v924, 64
    %v931 = vpop.permute.xlu0 %930
    %v933 = vmul.f32 %v923, %v931
    %935 = vrot.lane.b32.xlu0 %v933, 32
    %v936 = vpop.permute.xlu0 %935
    %v938 = vadd.f32 %v928, %v936
    %v939 = vtanh.pop %v938
    %941 = vrot.lane.b32.xlu0 %v939, 64
    %v942 = vpop.permute.xlu0 %941
    %v944 = vmul.f32 %v923, %v942
    %946 = vrot.lane.b32.xlu0 %v944, 32
    %v947 = vpop.permute.xlu0 %946
    %949 = vst.msk [vmem:[#allocation8 + $0x18] sm:$0xf] %vm287, %v947
    %v950 = vld [vmem:[#allocation2 + $0x30] sm:$0xf0]
    %v951 = vsel %vm177, %v947, 0
    %953 = vmatprep.subr.mxu0 0.0
    %954 = vmatpush1.msra.mxu0 0.0
    %955 = vmatprep.subr.mxu0 0.0
    %956 = vmatpush1.msra.mxu0 0.0
    %957 = vmatprep.subr.mxu0 0.0
    %958 = vmatpush1.msra.mxu0 0.0
    %959 = vmatprep.subr.mxu0 0.0
    %960 = vmatpush1.msra.mxu0 0.0
    %961 = vmatprep.subr.mxu0 0.0
    %962 = vmatpush1.msra.mxu0 0.0
    %963 = vmatprep.subr.mxu0 0.0
    %964 = vmatpush1.msra.mxu0 0.0
    %965 = vmatprep.subr.mxu0 0.0
    %966 = vmatpush1.msra.mxu0 0.0
    %967 = vmatprep.subr.mxu0 0.0
    %968 = vmatpush1.msra.mxu0 0.0
    %969 = vmatprep.subr.mxu0 0.0
    %970 = vmatpush1.msra.mxu0 0.0
    %971 = vmatprep.subr.mxu0 0.0
    %972 = vmatpush1.msra.mxu0 0.0
    %973 = vmatprep.subr.mxu0 0.0
    %974 = vmatpush1.msra.mxu0 0.0
    %975 = vmatprep.subr.mxu0 0.0
    %976 = vmatpush1.msra.mxu0 0.0
    %977 = vmatprep.subr.mxu0 0.0
    %978 = vmatpush1.msra.mxu0 %v173
    %979 = vmatprep.subr.mxu0 0.0
    %980 = vmatpush1.msra.mxu0 %v172
    %981 = vmatprep.subr.mxu0 0.0
    %982 = vmatpush1.msra.mxu0 %v171
    %983 = vmatprep.subr.mxu0 0.0
    %984 = vmatpush1.msra.mxu0 %v170
    %985 = vmatprep.subr.mxu0 0.0
    %986 = vmatpush2.msra.mxu0 0.0
    %987 = vmatprep.subr.mxu0 0.0
    %988 = vmatpush2.msra.mxu0 0.0
    %989 = vmatprep.subr.mxu0 0.0
    %990 = vmatpush2.msra.mxu0 0.0
    %991 = vmatprep.subr.mxu0 0.0
    %992 = vmatpush2.msra.mxu0 0.0
    %993 = vmatprep.subr.mxu0 0.0
    %994 = vmatpush2.msra.mxu0 0.0
    %995 = vmatprep.subr.mxu0 0.0
    %996 = vmatpush2.msra.mxu0 0.0
    %997 = vmatprep.subr.mxu0 0.0
    %998 = vmatpush2.msra.mxu0 0.0
    %999 = vmatprep.subr.mxu0 0.0
    %1000 = vmatpush2.msra.mxu0 0.0
    %1001 = vmatprep.subr.mxu0 0.0
    %1002 = vmatpush2.msra.mxu0 0.0
    %1003 = vmatprep.subr.mxu0 0.0
    %1004 = vmatpush2.msra.mxu0 0.0
    %1005 = vmatprep.subr.mxu0 0.0
    %1006 = vmatpush2.msra.mxu0 0.0
    %1007 = vmatprep.subr.mxu0 0.0
    %1008 = vmatpush2.msra.mxu0 0.0
    %1009 = vmatprep.subr.mxu0 0.0
    %1010 = vmatpush2.msra.mxu0 0.0
    %1011 = vmatprep.subr.mxu0 0.0
    %1012 = vmatpush2.msra.mxu0 0.0
    %1013 = vmatprep.subr.mxu0 0.0
    %1014 = vmatpush2.msra.mxu0 0.0
    %1015 = vmatprep.subr.mxu0 0.0
    %1016 = vmatpush2.msra.mxu0 0.0
    %1017 = vmatprep.mubr.f32.mxu0 0.0
    %1018 = vmatmul.mubr.f32.gmra.mxu0 %v951
    %v1019 = vpop.f32.mrf.mxu0
    %v1020 = vadd.f32 0.0, %v1019
    %v1021 = vpop.f32.mrf.mxu0
    %1022 = vdwg.mxu0
    %v1024 = vrot.slane %v1020, 4
    %v1026 = vadd.f32 %v950, %v1024
    %v1027 = vadd.f32 %v1026, %v256
    %v1028 = vxor.u32 %v1027, 2147483648
    %v1029 = vmul.f32 %v1028, 1.442695
    %v1030 = vpow.pop %v1029
    %v1031 = vadd.f32 %v1030, 1.0
    %v1032 = vrcp.pop %v1031
    %v1033 = vmul.f32 1.0, %v1032
    %v1034 = vtanh.pop %v1027
    %v1036 = vrot.slane %v938, 4
    %v1038 = vmul.f32 %v1033, %v1036
    %1040 = vrot.lane.b32.xlu0 %v1034, 64
    %v1041 = vpop.permute.xlu0 %1040
    %v1043 = vmul.f32 %v1033, %v1041
    %1045 = vrot.lane.b32.xlu0 %v1043, 32
    %v1046 = vpop.permute.xlu0 %1045
    %v1048 = vadd.f32 %v1038, %v1046
    %v1049 = vtanh.pop %v1048
    %1051 = vrot.lane.b32.xlu0 %v1049, 64
    %v1052 = vpop.permute.xlu0 %1051
    %v1054 = vmul.f32 %v1033, %v1052
    %1056 = vrot.lane.b32.xlu0 %v1054, 32
    %v1057 = vpop.permute.xlu0 %1056
    %1059 = vst.msk [vmem:[#allocation8 + $0x18] sm:$0xf0] %vm398, %v1057
    %v1060 = vld [vmem:[#allocation6] sm:$0xff]
    %v1061 = vld [vmem:[#allocation6 + $0x8] sm:$0xff]
    %v1062 = vld [vmem:[#allocation6 + $0x10] sm:$0xff]
    %v1063 = vld [vmem:[#allocation6 + $0x18] sm:$0xff]
    %v1064 = vld [vmem:[#allocation2 + $0x38] sm:$0xf0]
    %1065 = vmatprep.subr.mxu0 0.0
    %1066 = vmatpush1.msra.mxu0 0.0
    %1067 = vmatprep.subr.mxu0 0.0
    %1068 = vmatpush1.msra.mxu0 0.0
    %1069 = vmatprep.subr.mxu0 0.0
    %1070 = vmatpush1.msra.mxu0 0.0
    %1071 = vmatprep.subr.mxu0 0.0
    %1072 = vmatpush1.msra.mxu0 0.0
    %1073 = vmatprep.subr.mxu0 0.0
    %1074 = vmatpush1.msra.mxu0 0.0
    %1075 = vmatprep.subr.mxu0 0.0
    %1076 = vmatpush1.msra.mxu0 0.0
    %1077 = vmatprep.subr.mxu0 0.0
    %1078 = vmatpush1.msra.mxu0 0.0
    %1079 = vmatprep.subr.mxu0 0.0
    %1080 = vmatpush1.msra.mxu0 0.0
    %1081 = vmatprep.subr.mxu0 0.0
    %1082 = vmatpush1.msra.mxu0 0.0
    %1083 = vmatprep.subr.mxu0 0.0
    %1084 = vmatpush1.msra.mxu0 0.0
    %1085 = vmatprep.subr.mxu0 0.0
    %1086 = vmatpush1.msra.mxu0 0.0
    %1087 = vmatprep.subr.mxu0 0.0
    %1088 = vmatpush1.msra.mxu0 0.0
    %1089 = vmatprep.subr.mxu0 0.0
    %1090 = vmatpush1.msra.mxu0 %v1063
    %1091 = vmatprep.subr.mxu0 0.0
    %1092 = vmatpush1.msra.mxu0 %v1062
    %1093 = vmatprep.subr.mxu0 0.0
    %1094 = vmatpush1.msra.mxu0 %v1061
    %1095 = vmatprep.subr.mxu0 0.0
    %1096 = vmatpush1.msra.mxu0 %v1060
    %1097 = vmatprep.subr.mxu0 0.0
    %1098 = vmatpush2.msra.mxu0 0.0
    %1099 = vmatprep.subr.mxu0 0.0
    %1100 = vmatpush2.msra.mxu0 0.0
    %1101 = vmatprep.subr.mxu0 0.0
    %1102 = vmatpush2.msra.mxu0 0.0
    %1103 = vmatprep.subr.mxu0 0.0
    %1104 = vmatpush2.msra.mxu0 0.0
    %1105 = vmatprep.subr.mxu0 0.0
    %1106 = vmatpush2.msra.mxu0 0.0
    %1107 = vmatprep.subr.mxu0 0.0
    %1108 = vmatpush2.msra.mxu0 0.0
    %1109 = vmatprep.subr.mxu0 0.0
    %1110 = vmatpush2.msra.mxu0 0.0
    %1111 = vmatprep.subr.mxu0 0.0
    %1112 = vmatpush2.msra.mxu0 0.0
    %1113 = vmatprep.subr.mxu0 0.0
    %1114 = vmatpush2.msra.mxu0 0.0
    %1115 = vmatprep.subr.mxu0 0.0
    %1116 = vmatpush2.msra.mxu0 0.0
    %1117 = vmatprep.subr.mxu0 0.0
    %1118 = vmatpush2.msra.mxu0 0.0
    %1119 = vmatprep.subr.mxu0 0.0
    %1120 = vmatpush2.msra.mxu0 0.0
    %1121 = vmatprep.subr.mxu0 0.0
    %1122 = vmatpush2.msra.mxu0 0.0
    %1123 = vmatprep.subr.mxu0 0.0
    %1124 = vmatpush2.msra.mxu0 0.0
    %1125 = vmatprep.subr.mxu0 0.0
    %1126 = vmatpush2.msra.mxu0 0.0
    %1127 = vmatprep.subr.mxu0 0.0
    %1128 = vmatpush2.msra.mxu0 0.0
    %1129 = vmatprep.mubr.f32.mxu0 0.0
    %1130 = vmatmul.mubr.f32.gmra.mxu0 %v179
    %v1131 = vpop.f32.mrf.mxu0
    %v1132 = vadd.f32 0.0, %v1131
    %v1133 = vpop.f32.mrf.mxu0
    %1134 = vdwg.mxu0
    %v1136 = vrot.slane %v1132, 4
    %v1138 = vadd.f32 %v1064, %v1136
    %v1140 = vlaneseq
    %v1141 = vshrl.u32 %v1140, 7
    %v1142 = vsub.s32 0, %v1141
    %v1143 = vrot.slane %v175, %v1142
    %v1145 = vadd.f32 %v1138, %v1143
    %v1146 = vxor.u32 %v1145, 2147483648
    %v1147 = vmul.f32 %v1146, 1.442695
    %v1148 = vpow.pop %v1147
    %v1149 = vadd.f32 %v1148, 1.0
    %v1150 = vrcp.pop %v1149
    %v1151 = vmul.f32 1.0, %v1150
    %v1152 = vtanh.pop %v1145
    %v1153 = vmul.f32 %v1151, 0.0
    %1155 = vrot.lane.b32.xlu0 %v1152, 64
    %v1156 = vpop.permute.xlu0 %1155
    %v1158 = vmul.f32 %v1151, %v1156
    %1160 = vrot.lane.b32.xlu0 %v1158, 32
    %v1161 = vpop.permute.xlu0 %1160
    %v1163 = vadd.f32 %v1153, %v1161
    %v1164 = vtanh.pop %v1163
    %1166 = vrot.lane.b32.xlu0 %v1164, 64
    %v1167 = vpop.permute.xlu0 %1166
    %v1169 = vmul.f32 %v1151, %v1167
    %1171 = vrot.lane.b32.xlu0 %v1169, 64
    %v1172 = vpop.permute.xlu0 %1171
    %vm1174 = vcmask 523524
    %1175 = vst.msk [vmem:[#allocation8 + $0x18] sm:$0xf0] %vm1174, %v1172
    %v1176 = vld [vmem:[#allocation2 + $0x38] sm:$0xf]
    %v1177 = vrot.slane %v1169, 4
    %1178 = vrot.lane.b32.xlu0 %v1177, 32
    %v1179 = vpop.permute.xlu0 %1178
    %v1180 = vsel %vm177, %v1179, 0
    %1182 = vmatprep.subr.mxu0 0.0
    %1183 = vmatpush1.msra.mxu0 0.0
    %1184 = vmatprep.subr.mxu0 0.0
    %1185 = vmatpush1.msra.mxu0 0.0
    %1186 = vmatprep.subr.mxu0 0.0
    %1187 = vmatpush1.msra.mxu0 0.0
    %1188 = vmatprep.subr.mxu0 0.0
    %1189 = vmatpush1.msra.mxu0 0.0
    %1190 = vmatprep.subr.mxu0 0.0
    %1191 = vmatpush1.msra.mxu0 0.0
    %1192 = vmatprep.subr.mxu0 0.0
    %1193 = vmatpush1.msra.mxu0 0.0
    %1194 = vmatprep.subr.mxu0 0.0
    %1195 = vmatpush1.msra.mxu0 0.0
    %1196 = vmatprep.subr.mxu0 0.0
    %1197 = vmatpush1.msra.mxu0 0.0
    %1198 = vmatprep.subr.mxu0 0.0
    %1199 = vmatpush1.msra.mxu0 0.0
    %1200 = vmatprep.subr.mxu0 0.0
    %1201 = vmatpush1.msra.mxu0 0.0
    %1202 = vmatprep.subr.mxu0 0.0
    %1203 = vmatpush1.msra.mxu0 0.0
    %1204 = vmatprep.subr.mxu0 0.0
    %1205 = vmatpush1.msra.mxu0 0.0
    %1206 = vmatprep.subr.mxu0 0.0
    %1207 = vmatpush1.msra.mxu0 %v1063
    %1208 = vmatprep.subr.mxu0 0.0
    %1209 = vmatpush1.msra.mxu0 %v1062
    %1210 = vmatprep.subr.mxu0 0.0
    %1211 = vmatpush1.msra.mxu0 %v1061
    %1212 = vmatprep.subr.mxu0 0.0
    %1213 = vmatpush1.msra.mxu0 %v1060
    %1214 = vmatprep.subr.mxu0 0.0
    %1215 = vmatpush2.msra.mxu0 0.0
    %1216 = vmatprep.subr.mxu0 0.0
    %1217 = vmatpush2.msra.mxu0 0.0
    %1218 = vmatprep.subr.mxu0 0.0
    %1219 = vmatpush2.msra.mxu0 0.0
    %1220 = vmatprep.subr.mxu0 0.0
    %1221 = vmatpush2.msra.mxu0 0.0
    %1222 = vmatprep.subr.mxu0 0.0
    %1223 = vmatpush2.msra.mxu0 0.0
    %1224 = vmatprep.subr.mxu0 0.0
    %1225 = vmatpush2.msra.mxu0 0.0
    %1226 = vmatprep.subr.mxu0 0.0
    %1227 = vmatpush2.msra.mxu0 0.0
    %1228 = vmatprep.subr.mxu0 0.0
    %1229 = vmatpush2.msra.mxu0 0.0
    %1230 = vmatprep.subr.mxu0 0.0
    %1231 = vmatpush2.msra.mxu0 0.0
    %1232 = vmatprep.subr.mxu0 0.0
    %1233 = vmatpush2.msra.mxu0 0.0
    %1234 = vmatprep.subr.mxu0 0.0
    %1235 = vmatpush2.msra.mxu0 0.0
    %1236 = vmatprep.subr.mxu0 0.0
    %1237 = vmatpush2.msra.mxu0 0.0
    %1238 = vmatprep.subr.mxu0 0.0
    %1239 = vmatpush2.msra.mxu0 0.0
    %1240 = vmatprep.subr.mxu0 0.0
    %1241 = vmatpush2.msra.mxu0 0.0
    %1242 = vmatprep.subr.mxu0 0.0
    %1243 = vmatpush2.msra.mxu0 0.0
    %1244 = vmatprep.subr.mxu0 0.0
    %1245 = vmatpush2.msra.mxu0 0.0
    %1246 = vmatprep.mubr.f32.mxu0 0.0
    %1247 = vmatmul.mubr.f32.gmra.mxu0 %v1180
    %v1248 = vpop.f32.mrf.mxu0
    %v1249 = vadd.f32 0.0, %v1248
    %v1250 = vpop.f32.mrf.mxu0
    %1251 = vdwg.mxu0
    %v1252 = vadd.f32 %v1176, %v1249
    %v1253 = vadd.f32 %v1252, %v1143
    %v1254 = vxor.u32 %v1253, 2147483648
    %v1255 = vmul.f32 %v1254, 1.442695
    %v1256 = vpow.pop %v1255
    %v1257 = vadd.f32 %v1256, 1.0
    %v1258 = vrcp.pop %v1257
    %v1259 = vmul.f32 1.0, %v1258
    %v1260 = vtanh.pop %v1253
    %v1262 = vrot.slane %v1163, 4
    %v1264 = vmul.f32 %v1259, %v1262
    %1266 = vrot.lane.b32.xlu0 %v1260, 64
    %v1267 = vpop.permute.xlu0 %1266
    %v1269 = vmul.f32 %v1259, %v1267
    %1271 = vrot.lane.b32.xlu0 %v1269, 32
    %v1272 = vpop.permute.xlu0 %1271
    %v1274 = vadd.f32 %v1264, %v1272
    %v1275 = vtanh.pop %v1274
    %1277 = vrot.lane.b32.xlu0 %v1275, 64
    %v1278 = vpop.permute.xlu0 %1277
    %v1280 = vmul.f32 %v1259, %v1278
    %1282 = vrot.lane.b32.xlu0 %v1280, 64
    %v1283 = vpop.permute.xlu0 %1282
    %vm1285 = vcmask 519424
    %1286 = vst.msk [vmem:[#allocation8 + $0x18] sm:$0xf] %vm1285, %v1283
    %v1287 = vld [vmem:[#allocation2 + $0x28] sm:$0xf0]
    %1288 = vrot.lane.b32.xlu0 %v1280, 32
    %v1289 = vpop.permute.xlu0 %1288
    %v1290 = vsel %vm177, %v1289, 0
    %1292 = vmatprep.subr.mxu0 0.0
    %1293 = vmatpush1.msra.mxu0 0.0
    %1294 = vmatprep.subr.mxu0 0.0
    %1295 = vmatpush1.msra.mxu0 0.0
    %1296 = vmatprep.subr.mxu0 0.0
    %1297 = vmatpush1.msra.mxu0 0.0
    %1298 = vmatprep.subr.mxu0 0.0
    %1299 = vmatpush1.msra.mxu0 0.0
    %1300 = vmatprep.subr.mxu0 0.0
    %1301 = vmatpush1.msra.mxu0 0.0
    %1302 = vmatprep.subr.mxu0 0.0
    %1303 = vmatpush1.msra.mxu0 0.0
    %1304 = vmatprep.subr.mxu0 0.0
    %1305 = vmatpush1.msra.mxu0 0.0
    %1306 = vmatprep.subr.mxu0 0.0
    %1307 = vmatpush1.msra.mxu0 0.0
    %1308 = vmatprep.subr.mxu0 0.0
    %1309 = vmatpush1.msra.mxu0 0.0
    %1310 = vmatprep.subr.mxu0 0.0
    %1311 = vmatpush1.msra.mxu0 0.0
    %1312 = vmatprep.subr.mxu0 0.0
    %1313 = vmatpush1.msra.mxu0 0.0
    %1314 = vmatprep.subr.mxu0 0.0
    %1315 = vmatpush1.msra.mxu0 0.0
    %1316 = vmatprep.subr.mxu0 0.0
    %1317 = vmatpush1.msra.mxu0 %v1063
    %1318 = vmatprep.subr.mxu0 0.0
    %1319 = vmatpush1.msra.mxu0 %v1062
    %1320 = vmatprep.subr.mxu0 0.0
    %1321 = vmatpush1.msra.mxu0 %v1061
    %1322 = vmatprep.subr.mxu0 0.0
    %1323 = vmatpush1.msra.mxu0 %v1060
    %1324 = vmatprep.subr.mxu0 0.0
    %1325 = vmatpush2.msra.mxu0 0.0
    %1326 = vmatprep.subr.mxu0 0.0
    %1327 = vmatpush2.msra.mxu0 0.0
    %1328 = vmatprep.subr.mxu0 0.0
    %1329 = vmatpush2.msra.mxu0 0.0
    %1330 = vmatprep.subr.mxu0 0.0
    %1331 = vmatpush2.msra.mxu0 0.0
    %1332 = vmatprep.subr.mxu0 0.0
    %1333 = vmatpush2.msra.mxu0 0.0
    %1334 = vmatprep.subr.mxu0 0.0
    %1335 = vmatpush2.msra.mxu0 0.0
    %1336 = vmatprep.subr.mxu0 0.0
    %1337 = vmatpush2.msra.mxu0 0.0
    %1338 = vmatprep.subr.mxu0 0.0
    %1339 = vmatpush2.msra.mxu0 0.0
    %1340 = vmatprep.subr.mxu0 0.0
    %1341 = vmatpush2.msra.mxu0 0.0
    %1342 = vmatprep.subr.mxu0 0.0
    %1343 = vmatpush2.msra.mxu0 0.0
    %1344 = vmatprep.subr.mxu0 0.0
    %1345 = vmatpush2.msra.mxu0 0.0
    %1346 = vmatprep.subr.mxu0 0.0
    %1347 = vmatpush2.msra.mxu0 0.0
    %1348 = vmatprep.subr.mxu0 0.0
    %1349 = vmatpush2.msra.mxu0 0.0
    %1350 = vmatprep.subr.mxu0 0.0
    %1351 = vmatpush2.msra.mxu0 0.0
    %1352 = vmatprep.subr.mxu0 0.0
    %1353 = vmatpush2.msra.mxu0 0.0
    %1354 = vmatprep.subr.mxu0 0.0
    %1355 = vmatpush2.msra.mxu0 0.0
    %1356 = vmatprep.mubr.f32.mxu0 0.0
    %1357 = vmatmul.mubr.f32.gmra.mxu0 %v1290
    %v1358 = vpop.f32.mrf.mxu0
    %v1359 = vadd.f32 0.0, %v1358
    %v1360 = vpop.f32.mrf.mxu0
    %1361 = vdwg.mxu0
    %v1363 = vrot.slane %v1359, 4
    %v1365 = vadd.f32 %v1287, %v1363
    %v1366 = vadd.f32 %v1365, %v1143
    %v1367 = vxor.u32 %v1366, 2147483648
    %v1368 = vmul.f32 %v1367, 1.442695
    %v1369 = vpow.pop %v1368
    %v1370 = vadd.f32 %v1369, 1.0
    %v1371 = vrcp.pop %v1370
    %v1372 = vmul.f32 1.0, %v1371
    %v1373 = vtanh.pop %v1366
    %v1375 = vrot.slane %v1274, 4
    %v1377 = vmul.f32 %v1372, %v1375
    %1379 = vrot.lane.b32.xlu0 %v1373, 64
    %v1380 = vpop.permute.xlu0 %1379
    %v1382 = vmul.f32 %v1372, %v1380
    %1384 = vrot.lane.b32.xlu0 %v1382, 32
    %v1385 = vpop.permute.xlu0 %1384
    %v1387 = vadd.f32 %v1377, %v1385
    %v1388 = vtanh.pop %v1387
    %1390 = vrot.lane.b32.xlu0 %v1388, 64
    %v1391 = vpop.permute.xlu0 %1390
    %v1393 = vmul.f32 %v1372, %v1391
    %1395 = vrot.lane.b32.xlu0 %v1393, 64
    %v1396 = vpop.permute.xlu0 %1395
    %1398 = vst.msk [vmem:[#allocation8 + $0x10] sm:$0xf0] %vm1174, %v1396
    %v1399 = vld [vmem:[#allocation2 + $0x28] sm:$0xf]
    %v1400 = vrot.slane %v1393, 4
    %1401 = vrot.lane.b32.xlu0 %v1400, 32
    %v1402 = vpop.permute.xlu0 %1401
    %v1403 = vsel %vm177, %v1402, 0
    %1405 = vmatprep.subr.mxu0 0.0
    %1406 = vmatpush1.msra.mxu0 0.0
    %1407 = vmatprep.subr.mxu0 0.0
    %1408 = vmatpush1.msra.mxu0 0.0
    %1409 = vmatprep.subr.mxu0 0.0
    %1410 = vmatpush1.msra.mxu0 0.0
    %1411 = vmatprep.subr.mxu0 0.0
    %1412 = vmatpush1.msra.mxu0 0.0
    %1413 = vmatprep.subr.mxu0 0.0
    %1414 = vmatpush1.msra.mxu0 0.0
    %1415 = vmatprep.subr.mxu0 0.0
    %1416 = vmatpush1.msra.mxu0 0.0
    %1417 = vmatprep.subr.mxu0 0.0
    %1418 = vmatpush1.msra.mxu0 0.0
    %1419 = vmatprep.subr.mxu0 0.0
    %1420 = vmatpush1.msra.mxu0 0.0
    %1421 = vmatprep.subr.mxu0 0.0
    %1422 = vmatpush1.msra.mxu0 0.0
    %1423 = vmatprep.subr.mxu0 0.0
    %1424 = vmatpush1.msra.mxu0 0.0
    %1425 = vmatprep.subr.mxu0 0.0
    %1426 = vmatpush1.msra.mxu0 0.0
    %1427 = vmatprep.subr.mxu0 0.0
    %1428 = vmatpush1.msra.mxu0 0.0
    %1429 = vmatprep.subr.mxu0 0.0
    %1430 = vmatpush1.msra.mxu0 %v1063
    %1431 = vmatprep.subr.mxu0 0.0
    %1432 = vmatpush1.msra.mxu0 %v1062
    %1433 = vmatprep.subr.mxu0 0.0
    %1434 = vmatpush1.msra.mxu0 %v1061
    %1435 = vmatprep.subr.mxu0 0.0
    %1436 = vmatpush1.msra.mxu0 %v1060
    %1437 = vmatprep.subr.mxu0 0.0
    %1438 = vmatpush2.msra.mxu0 0.0
    %1439 = vmatprep.subr.mxu0 0.0
    %1440 = vmatpush2.msra.mxu0 0.0
    %1441 = vmatprep.subr.mxu0 0.0
    %1442 = vmatpush2.msra.mxu0 0.0
    %1443 = vmatprep.subr.mxu0 0.0
    %1444 = vmatpush2.msra.mxu0 0.0
    %1445 = vmatprep.subr.mxu0 0.0
    %1446 = vmatpush2.msra.mxu0 0.0
    %1447 = vmatprep.subr.mxu0 0.0
    %1448 = vmatpush2.msra.mxu0 0.0
    %1449 = vmatprep.subr.mxu0 0.0
    %1450 = vmatpush2.msra.mxu0 0.0
    %1451 = vmatprep.subr.mxu0 0.0
    %1452 = vmatpush2.msra.mxu0 0.0
    %1453 = vmatprep.subr.mxu0 0.0
    %1454 = vmatpush2.msra.mxu0 0.0
    %1455 = vmatprep.subr.mxu0 0.0
    %1456 = vmatpush2.msra.mxu0 0.0
    %1457 = vmatprep.subr.mxu0 0.0
    %1458 = vmatpush2.msra.mxu0 0.0
    %1459 = vmatprep.subr.mxu0 0.0
    %1460 = vmatpush2.msra.mxu0 0.0
    %1461 = vmatprep.subr.mxu0 0.0
    %1462 = vmatpush2.msra.mxu0 0.0
    %1463 = vmatprep.subr.mxu0 0.0
    %1464 = vmatpush2.msra.mxu0 0.0
    %1465 = vmatprep.subr.mxu0 0.0
    %1466 = vmatpush2.msra.mxu0 0.0
    %1467 = vmatprep.subr.mxu0 0.0
    %1468 = vmatpush2.msra.mxu0 0.0
    %1469 = vmatprep.mubr.f32.mxu0 0.0
    %1470 = vmatmul.mubr.f32.gmra.mxu0 %v1403
    %v1471 = vpop.f32.mrf.mxu0
    %v1472 = vadd.f32 0.0, %v1471
    %v1473 = vpop.f32.mrf.mxu0
    %1474 = vdwg.mxu0
    %v1475 = vadd.f32 %v1399, %v1472
    %v1476 = vadd.f32 %v1475, %v1143
    %v1477 = vxor.u32 %v1476, 2147483648
    %v1478 = vmul.f32 %v1477, 1.442695
    %v1479 = vpow.pop %v1478
    %v1480 = vadd.f32 %v1479, 1.0
    %v1481 = vrcp.pop %v1480
    %v1482 = vmul.f32 1.0, %v1481
    %v1483 = vtanh.pop %v1476
    %v1485 = vrot.slane %v1387, 4
    %v1487 = vmul.f32 %v1482, %v1485
    %1489 = vrot.lane.b32.xlu0 %v1483, 64
    %v1490 = vpop.permute.xlu0 %1489
    %v1492 = vmul.f32 %v1482, %v1490
    %1494 = vrot.lane.b32.xlu0 %v1492, 32
    %v1495 = vpop.permute.xlu0 %1494
    %v1497 = vadd.f32 %v1487, %v1495
    %v1498 = vtanh.pop %v1497
    %1500 = vrot.lane.b32.xlu0 %v1498, 64
    %v1501 = vpop.permute.xlu0 %1500
    %v1503 = vmul.f32 %v1482, %v1501
    %1505 = vrot.lane.b32.xlu0 %v1503, 64
    %v1506 = vpop.permute.xlu0 %1505
    %1508 = vst.msk [vmem:[#allocation8 + $0x10] sm:$0xf] %vm1285, %v1506
    %v1509 = vld [vmem:[#allocation2 + $0x18] sm:$0xf0]
    %1510 = vrot.lane.b32.xlu0 %v1503, 32
    %v1511 = vpop.permute.xlu0 %1510
    %v1512 = vsel %vm177, %v1511, 0
    %1514 = vmatprep.subr.mxu0 0.0
    %1515 = vmatpush1.msra.mxu0 0.0
    %1516 = vmatprep.subr.mxu0 0.0
    %1517 = vmatpush1.msra.mxu0 0.0
    %1518 = vmatprep.subr.mxu0 0.0
    %1519 = vmatpush1.msra.mxu0 0.0
    %1520 = vmatprep.subr.mxu0 0.0
    %1521 = vmatpush1.msra.mxu0 0.0
    %1522 = vmatprep.subr.mxu0 0.0
    %1523 = vmatpush1.msra.mxu0 0.0
    %1524 = vmatprep.subr.mxu0 0.0
    %1525 = vmatpush1.msra.mxu0 0.0
    %1526 = vmatprep.subr.mxu0 0.0
    %1527 = vmatpush1.msra.mxu0 0.0
    %1528 = vmatprep.subr.mxu0 0.0
    %1529 = vmatpush1.msra.mxu0 0.0
    %1530 = vmatprep.subr.mxu0 0.0
    %1531 = vmatpush1.msra.mxu0 0.0
    %1532 = vmatprep.subr.mxu0 0.0
    %1533 = vmatpush1.msra.mxu0 0.0
    %1534 = vmatprep.subr.mxu0 0.0
    %1535 = vmatpush1.msra.mxu0 0.0
    %1536 = vmatprep.subr.mxu0 0.0
    %1537 = vmatpush1.msra.mxu0 0.0
    %1538 = vmatprep.subr.mxu0 0.0
    %1539 = vmatpush1.msra.mxu0 %v1063
    %1540 = vmatprep.subr.mxu0 0.0
    %1541 = vmatpush1.msra.mxu0 %v1062
    %1542 = vmatprep.subr.mxu0 0.0
    %1543 = vmatpush1.msra.mxu0 %v1061
    %1544 = vmatprep.subr.mxu0 0.0
    %1545 = vmatpush1.msra.mxu0 %v1060
    %1546 = vmatprep.subr.mxu0 0.0
    %1547 = vmatpush2.msra.mxu0 0.0
    %1548 = vmatprep.subr.mxu0 0.0
    %1549 = vmatpush2.msra.mxu0 0.0
    %1550 = vmatprep.subr.mxu0 0.0
    %1551 = vmatpush2.msra.mxu0 0.0
    %1552 = vmatprep.subr.mxu0 0.0
    %1553 = vmatpush2.msra.mxu0 0.0
    %1554 = vmatprep.subr.mxu0 0.0
    %1555 = vmatpush2.msra.mxu0 0.0
    %1556 = vmatprep.subr.mxu0 0.0
    %1557 = vmatpush2.msra.mxu0 0.0
    %1558 = vmatprep.subr.mxu0 0.0
    %1559 = vmatpush2.msra.mxu0 0.0
    %1560 = vmatprep.subr.mxu0 0.0
    %1561 = vmatpush2.msra.mxu0 0.0
    %1562 = vmatprep.subr.mxu0 0.0
    %1563 = vmatpush2.msra.mxu0 0.0
    %1564 = vmatprep.subr.mxu0 0.0
    %1565 = vmatpush2.msra.mxu0 0.0
    %1566 = vmatprep.subr.mxu0 0.0
    %1567 = vmatpush2.msra.mxu0 0.0
    %1568 = vmatprep.subr.mxu0 0.0
    %1569 = vmatpush2.msra.mxu0 0.0
    %1570 = vmatprep.subr.mxu0 0.0
    %1571 = vmatpush2.msra.mxu0 0.0
    %1572 = vmatprep.subr.mxu0 0.0
    %1573 = vmatpush2.msra.mxu0 0.0
    %1574 = vmatprep.subr.mxu0 0.0
    %1575 = vmatpush2.msra.mxu0 0.0
    %1576 = vmatprep.subr.mxu0 0.0
    %1577 = vmatpush2.msra.mxu0 0.0
    %1578 = vmatprep.mubr.f32.mxu0 0.0
    %1579 = vmatmul.mubr.f32.gmra.mxu0 %v1512
    %v1580 = vpop.f32.mrf.mxu0
    %v1581 = vadd.f32 0.0, %v1580
    %v1582 = vpop.f32.mrf.mxu0
    %1583 = vdwg.mxu0
    %v1585 = vrot.slane %v1581, 4
    %v1587 = vadd.f32 %v1509, %v1585
    %v1588 = vadd.f32 %v1587, %v1143
    %v1589 = vxor.u32 %v1588, 2147483648
    %v1590 = vmul.f32 %v1589, 1.442695
    %v1591 = vpow.pop %v1590
    %v1592 = vadd.f32 %v1591, 1.0
    %v1593 = vrcp.pop %v1592
    %v1594 = vmul.f32 1.0, %v1593
    %v1595 = vtanh.pop %v1588
    %v1597 = vrot.slane %v1497, 4
    %v1599 = vmul.f32 %v1594, %v1597
    %1601 = vrot.lane.b32.xlu0 %v1595, 64
    %v1602 = vpop.permute.xlu0 %1601
    %v1604 = vmul.f32 %v1594, %v1602
    %1606 = vrot.lane.b32.xlu0 %v1604, 32
    %v1607 = vpop.permute.xlu0 %1606
    %v1609 = vadd.f32 %v1599, %v1607
    %v1610 = vtanh.pop %v1609
    %1612 = vrot.lane.b32.xlu0 %v1610, 64
    %v1613 = vpop.permute.xlu0 %1612
    %v1615 = vmul.f32 %v1594, %v1613
    %1617 = vrot.lane.b32.xlu0 %v1615, 64
    %v1618 = vpop.permute.xlu0 %1617
    %1620 = vst.msk [vmem:[#allocation8 + $0x8] sm:$0xf0] %vm1174, %v1618
    %v1621 = vld [vmem:[#allocation2 + $0x18] sm:$0xf]
    %v1622 = vrot.slane %v1615, 4
    %1623 = vrot.lane.b32.xlu0 %v1622, 32
    %v1624 = vpop.permute.xlu0 %1623
    %v1625 = vsel %vm177, %v1624, 0
    %1627 = vmatprep.subr.mxu0 0.0
    %1628 = vmatpush1.msra.mxu0 0.0
    %1629 = vmatprep.subr.mxu0 0.0
    %1630 = vmatpush1.msra.mxu0 0.0
    %1631 = vmatprep.subr.mxu0 0.0
    %1632 = vmatpush1.msra.mxu0 0.0
    %1633 = vmatprep.subr.mxu0 0.0
    %1634 = vmatpush1.msra.mxu0 0.0
    %1635 = vmatprep.subr.mxu0 0.0
    %1636 = vmatpush1.msra.mxu0 0.0
    %1637 = vmatprep.subr.mxu0 0.0
    %1638 = vmatpush1.msra.mxu0 0.0
    %1639 = vmatprep.subr.mxu0 0.0
    %1640 = vmatpush1.msra.mxu0 0.0
    %1641 = vmatprep.subr.mxu0 0.0
    %1642 = vmatpush1.msra.mxu0 0.0
    %1643 = vmatprep.subr.mxu0 0.0
    %1644 = vmatpush1.msra.mxu0 0.0
    %1645 = vmatprep.subr.mxu0 0.0
    %1646 = vmatpush1.msra.mxu0 0.0
    %1647 = vmatprep.subr.mxu0 0.0
    %1648 = vmatpush1.msra.mxu0 0.0
    %1649 = vmatprep.subr.mxu0 0.0
    %1650 = vmatpush1.msra.mxu0 0.0
    %1651 = vmatprep.subr.mxu0 0.0
    %1652 = vmatpush1.msra.mxu0 %v1063
    %1653 = vmatprep.subr.mxu0 0.0
    %1654 = vmatpush1.msra.mxu0 %v1062
    %1655 = vmatprep.subr.mxu0 0.0
    %1656 = vmatpush1.msra.mxu0 %v1061
    %1657 = vmatprep.subr.mxu0 0.0
    %1658 = vmatpush1.msra.mxu0 %v1060
    %1659 = vmatprep.subr.mxu0 0.0
    %1660 = vmatpush2.msra.mxu0 0.0
    %1661 = vmatprep.subr.mxu0 0.0
    %1662 = vmatpush2.msra.mxu0 0.0
    %1663 = vmatprep.subr.mxu0 0.0
    %1664 = vmatpush2.msra.mxu0 0.0
    %1665 = vmatprep.subr.mxu0 0.0
    %1666 = vmatpush2.msra.mxu0 0.0
    %1667 = vmatprep.subr.mxu0 0.0
    %1668 = vmatpush2.msra.mxu0 0.0
    %1669 = vmatprep.subr.mxu0 0.0
    %1670 = vmatpush2.msra.mxu0 0.0
    %1671 = vmatprep.subr.mxu0 0.0
    %1672 = vmatpush2.msra.mxu0 0.0
    %1673 = vmatprep.subr.mxu0 0.0
    %1674 = vmatpush2.msra.mxu0 0.0
    %1675 = vmatprep.subr.mxu0 0.0
    %1676 = vmatpush2.msra.mxu0 0.0
    %1677 = vmatprep.subr.mxu0 0.0
    %1678 = vmatpush2.msra.mxu0 0.0
    %1679 = vmatprep.subr.mxu0 0.0
    %1680 = vmatpush2.msra.mxu0 0.0
    %1681 = vmatprep.subr.mxu0 0.0
    %1682 = vmatpush2.msra.mxu0 0.0
    %1683 = vmatprep.subr.mxu0 0.0
    %1684 = vmatpush2.msra.mxu0 0.0
    %1685 = vmatprep.subr.mxu0 0.0
    %1686 = vmatpush2.msra.mxu0 0.0
    %1687 = vmatprep.subr.mxu0 0.0
    %1688 = vmatpush2.msra.mxu0 0.0
    %1689 = vmatprep.subr.mxu0 0.0
    %1690 = vmatpush2.msra.mxu0 0.0
    %1691 = vmatprep.mubr.f32.mxu0 0.0
    %1692 = vmatmul.mubr.f32.gmra.mxu0 %v1625
    %v1693 = vpop.f32.mrf.mxu0
    %v1694 = vadd.f32 0.0, %v1693
    %v1695 = vpop.f32.mrf.mxu0
    %1696 = vdwg.mxu0
    %v1697 = vadd.f32 %v1621, %v1694
    %v1698 = vadd.f32 %v1697, %v1143
    %v1699 = vxor.u32 %v1698, 2147483648
    %v1700 = vmul.f32 %v1699, 1.442695
    %v1701 = vpow.pop %v1700
    %v1702 = vadd.f32 %v1701, 1.0
    %v1703 = vrcp.pop %v1702
    %v1704 = vmul.f32 1.0, %v1703
    %v1705 = vtanh.pop %v1698
    %v1707 = vrot.slane %v1609, 4
    %v1709 = vmul.f32 %v1704, %v1707
    %1711 = vrot.lane.b32.xlu0 %v1705, 64
    %v1712 = vpop.permute.xlu0 %1711
    %v1714 = vmul.f32 %v1704, %v1712
    %1716 = vrot.lane.b32.xlu0 %v1714, 32
    %v1717 = vpop.permute.xlu0 %1716
    %v1719 = vadd.f32 %v1709, %v1717
    %v1720 = vtanh.pop %v1719
    %1722 = vrot.lane.b32.xlu0 %v1720, 64
    %v1723 = vpop.permute.xlu0 %1722
    %v1725 = vmul.f32 %v1704, %v1723
    %1727 = vrot.lane.b32.xlu0 %v1725, 64
    %v1728 = vpop.permute.xlu0 %1727
    %1730 = vst.msk [vmem:[#allocation8 + $0x8] sm:$0xf] %vm1285, %v1728
    %v1731 = vld [vmem:[#allocation2 + $0x8] sm:$0xf0]
    %1732 = vrot.lane.b32.xlu0 %v1725, 32
    %v1733 = vpop.permute.xlu0 %1732
    %v1734 = vsel %vm177, %v1733, 0
    %1736 = vmatprep.subr.mxu0 0.0
    %1737 = vmatpush1.msra.mxu0 0.0
    %1738 = vmatprep.subr.mxu0 0.0
    %1739 = vmatpush1.msra.mxu0 0.0
    %1740 = vmatprep.subr.mxu0 0.0
    %1741 = vmatpush1.msra.mxu0 0.0
    %1742 = vmatprep.subr.mxu0 0.0
    %1743 = vmatpush1.msra.mxu0 0.0
    %1744 = vmatprep.subr.mxu0 0.0
    %1745 = vmatpush1.msra.mxu0 0.0
    %1746 = vmatprep.subr.mxu0 0.0
    %1747 = vmatpush1.msra.mxu0 0.0
    %1748 = vmatprep.subr.mxu0 0.0
    %1749 = vmatpush1.msra.mxu0 0.0
    %1750 = vmatprep.subr.mxu0 0.0
    %1751 = vmatpush1.msra.mxu0 0.0
    %1752 = vmatprep.subr.mxu0 0.0
    %1753 = vmatpush1.msra.mxu0 0.0
    %1754 = vmatprep.subr.mxu0 0.0
    %1755 = vmatpush1.msra.mxu0 0.0
    %1756 = vmatprep.subr.mxu0 0.0
    %1757 = vmatpush1.msra.mxu0 0.0
    %1758 = vmatprep.subr.mxu0 0.0
    %1759 = vmatpush1.msra.mxu0 0.0
    %1760 = vmatprep.subr.mxu0 0.0
    %1761 = vmatpush1.msra.mxu0 %v1063
    %1762 = vmatprep.subr.mxu0 0.0
    %1763 = vmatpush1.msra.mxu0 %v1062
    %1764 = vmatprep.subr.mxu0 0.0
    %1765 = vmatpush1.msra.mxu0 %v1061
    %1766 = vmatprep.subr.mxu0 0.0
    %1767 = vmatpush1.msra.mxu0 %v1060
    %1768 = vmatprep.subr.mxu0 0.0
    %1769 = vmatpush2.msra.mxu0 0.0
    %1770 = vmatprep.subr.mxu0 0.0
    %1771 = vmatpush2.msra.mxu0 0.0
    %1772 = vmatprep.subr.mxu0 0.0
    %1773 = vmatpush2.msra.mxu0 0.0
    %1774 = vmatprep.subr.mxu0 0.0
    %1775 = vmatpush2.msra.mxu0 0.0
    %1776 = vmatprep.subr.mxu0 0.0
    %1777 = vmatpush2.msra.mxu0 0.0
    %1778 = vmatprep.subr.mxu0 0.0
    %1779 = vmatpush2.msra.mxu0 0.0
    %1780 = vmatprep.subr.mxu0 0.0
    %1781 = vmatpush2.msra.mxu0 0.0
    %1782 = vmatprep.subr.mxu0 0.0
    %1783 = vmatpush2.msra.mxu0 0.0
    %1784 = vmatprep.subr.mxu0 0.0
    %1785 = vmatpush2.msra.mxu0 0.0
    %1786 = vmatprep.subr.mxu0 0.0
    %1787 = vmatpush2.msra.mxu0 0.0
    %1788 = vmatprep.subr.mxu0 0.0
    %1789 = vmatpush2.msra.mxu0 0.0
    %1790 = vmatprep.subr.mxu0 0.0
    %1791 = vmatpush2.msra.mxu0 0.0
    %1792 = vmatprep.subr.mxu0 0.0
    %1793 = vmatpush2.msra.mxu0 0.0
    %1794 = vmatprep.subr.mxu0 0.0
    %1795 = vmatpush2.msra.mxu0 0.0
    %1796 = vmatprep.subr.mxu0 0.0
    %1797 = vmatpush2.msra.mxu0 0.0
    %1798 = vmatprep.subr.mxu0 0.0
    %1799 = vmatpush2.msra.mxu0 0.0
    %1800 = vmatprep.mubr.f32.mxu0 0.0
    %1801 = vmatmul.mubr.f32.gmra.mxu0 %v1734
    %v1802 = vpop.f32.mrf.mxu0
    %v1803 = vadd.f32 0.0, %v1802
    %v1804 = vpop.f32.mrf.mxu0
    %1805 = vdwg.mxu0
    %v1807 = vrot.slane %v1803, 4
    %v1809 = vadd.f32 %v1731, %v1807
    %v1810 = vadd.f32 %v1809, %v1143
    %v1811 = vxor.u32 %v1810, 2147483648
    %v1812 = vmul.f32 %v1811, 1.442695
    %v1813 = vpow.pop %v1812
    %v1814 = vadd.f32 %v1813, 1.0
    %v1815 = vrcp.pop %v1814
    %v1816 = vmul.f32 1.0, %v1815
    %v1817 = vtanh.pop %v1810
    %v1819 = vrot.slane %v1719, 4
    %v1821 = vmul.f32 %v1816, %v1819
    %1823 = vrot.lane.b32.xlu0 %v1817, 64
    %v1824 = vpop.permute.xlu0 %1823
    %v1826 = vmul.f32 %v1816, %v1824
    %1828 = vrot.lane.b32.xlu0 %v1826, 32
    %v1829 = vpop.permute.xlu0 %1828
    %v1831 = vadd.f32 %v1821, %v1829
    %v1832 = vtanh.pop %v1831
    %1834 = vrot.lane.b32.xlu0 %v1832, 64
    %v1835 = vpop.permute.xlu0 %1834
    %v1837 = vmul.f32 %v1816, %v1835
    %1839 = vrot.lane.b32.xlu0 %v1837, 64
    %v1840 = vpop.permute.xlu0 %1839
    %1842 = vst.msk [vmem:[#allocation8] sm:$0xf0] %vm1174, %v1840
    %v1843 = vld [vmem:[#allocation2 + $0x8] sm:$0xf]
    %v1844 = vrot.slane %v1837, 4
    %1845 = vrot.lane.b32.xlu0 %v1844, 32
    %v1846 = vpop.permute.xlu0 %1845
    %v1847 = vsel %vm177, %v1846, 0
    %1849 = vmatprep.subr.mxu0 0.0
    %1850 = vmatpush1.msra.mxu0 0.0
    %1851 = vmatprep.subr.mxu0 0.0
    %1852 = vmatpush1.msra.mxu0 0.0
    %1853 = vmatprep.subr.mxu0 0.0
    %1854 = vmatpush1.msra.mxu0 0.0
    %1855 = vmatprep.subr.mxu0 0.0
    %1856 = vmatpush1.msra.mxu0 0.0
    %1857 = vmatprep.subr.mxu0 0.0
    %1858 = vmatpush1.msra.mxu0 0.0
    %1859 = vmatprep.subr.mxu0 0.0
    %1860 = vmatpush1.msra.mxu0 0.0
    %1861 = vmatprep.subr.mxu0 0.0
    %1862 = vmatpush1.msra.mxu0 0.0
    %1863 = vmatprep.subr.mxu0 0.0
    %1864 = vmatpush1.msra.mxu0 0.0
    %1865 = vmatprep.subr.mxu0 0.0
    %1866 = vmatpush1.msra.mxu0 0.0
    %1867 = vmatprep.subr.mxu0 0.0
    %1868 = vmatpush1.msra.mxu0 0.0
    %1869 = vmatprep.subr.mxu0 0.0
    %1870 = vmatpush1.msra.mxu0 0.0
    %1871 = vmatprep.subr.mxu0 0.0
    %1872 = vmatpush1.msra.mxu0 0.0
    %1873 = vmatprep.subr.mxu0 0.0
    %1874 = vmatpush1.msra.mxu0 %v1063
    %1875 = vmatprep.subr.mxu0 0.0
    %1876 = vmatpush1.msra.mxu0 %v1062
    %1877 = vmatprep.subr.mxu0 0.0
    %1878 = vmatpush1.msra.mxu0 %v1061
    %1879 = vmatprep.subr.mxu0 0.0
    %1880 = vmatpush1.msra.mxu0 %v1060
    %1881 = vmatprep.subr.mxu0 0.0
    %1882 = vmatpush2.msra.mxu0 0.0
    %1883 = vmatprep.subr.mxu0 0.0
    %1884 = vmatpush2.msra.mxu0 0.0
    %1885 = vmatprep.subr.mxu0 0.0
    %1886 = vmatpush2.msra.mxu0 0.0
    %1887 = vmatprep.subr.mxu0 0.0
    %1888 = vmatpush2.msra.mxu0 0.0
    %1889 = vmatprep.subr.mxu0 0.0
    %1890 = vmatpush2.msra.mxu0 0.0
    %1891 = vmatprep.subr.mxu0 0.0
    %1892 = vmatpush2.msra.mxu0 0.0
    %1893 = vmatprep.subr.mxu0 0.0
    %1894 = vmatpush2.msra.mxu0 0.0
    %1895 = vmatprep.subr.mxu0 0.0
    %1896 = vmatpush2.msra.mxu0 0.0
    %1897 = vmatprep.subr.mxu0 0.0
    %1898 = vmatpush2.msra.mxu0 0.0
    %1899 = vmatprep.subr.mxu0 0.0
    %1900 = vmatpush2.msra.mxu0 0.0
    %1901 = vmatprep.subr.mxu0 0.0
    %1902 = vmatpush2.msra.mxu0 0.0
    %1903 = vmatprep.subr.mxu0 0.0
    %1904 = vmatpush2.msra.mxu0 0.0
    %1905 = vmatprep.subr.mxu0 0.0
    %1906 = vmatpush2.msra.mxu0 0.0
    %1907 = vmatprep.subr.mxu0 0.0
    %1908 = vmatpush2.msra.mxu0 0.0
    %1909 = vmatprep.subr.mxu0 0.0
    %1910 = vmatpush2.msra.mxu0 0.0
    %1911 = vmatprep.subr.mxu0 0.0
    %1912 = vmatpush2.msra.mxu0 0.0
    %1913 = vmatprep.mubr.f32.mxu0 0.0
    %1914 = vmatmul.mubr.f32.gmra.mxu0 %v1847
    %v1915 = vpop.f32.mrf.mxu0
    %v1916 = vadd.f32 0.0, %v1915
    %v1917 = vpop.f32.mrf.mxu0
    %1918 = vdwg.mxu0
    %v1919 = vadd.f32 %v1843, %v1916
    %v1920 = vadd.f32 %v1919, %v1143
    %v1921 = vxor.u32 %v1920, 2147483648
    %v1922 = vmul.f32 %v1921, 1.442695
    %v1923 = vpow.pop %v1922
    %v1924 = vadd.f32 %v1923, 1.0
    %v1925 = vrcp.pop %v1924
    %v1926 = vmul.f32 1.0, %v1925
    %v1927 = vtanh.pop %v1920
    %v1929 = vrot.slane %v1831, 4
    %v1931 = vmul.f32 %v1926, %v1929
    %1933 = vrot.lane.b32.xlu0 %v1927, 64
    %v1934 = vpop.permute.xlu0 %1933
    %v1936 = vmul.f32 %v1926, %v1934
    %1938 = vrot.lane.b32.xlu0 %v1936, 32
    %v1939 = vpop.permute.xlu0 %1938
    %v1941 = vadd.f32 %v1931, %v1939
    %v1942 = vtanh.pop %v1941
    %1944 = vrot.lane.b32.xlu0 %v1942, 64
    %v1945 = vpop.permute.xlu0 %1944
    %v1947 = vmul.f32 %v1926, %v1945
    %1949 = vrot.lane.b32.xlu0 %v1947, 64
    %v1950 = vpop.permute.xlu0 %1949
    %1952 = vst.msk [vmem:[#allocation8] sm:$0xf] %vm1285, %v1950
    // Predicated region
    $region34: #{tpu_custom_call.1} parent=1 // pred_check
      _
    $region35: #{tpu_custom_call.1} parent=1 // pred_check_branch
      %1954 = sbr.rel (0) target = $region37
    $region36: #{tpu_custom_call.1} parent=1 // pred_region
      %s1956 = ssub.s32 512, 512
      %1957 = vsyncadd [#allocation5], %s1956
      %s1958 = sshll.u32 [#allocation8], 4
      %s1959 = int_to_ptr.vmem [resolvable:$true] %s1958
      %1964 = dma.vmem_to_hbm [thread:$0]  %s1959, 512, %s6, [#allocation5], 128, 128, 8
    $region37: #{tpu_custom_call.1} parent=1 // pred_fallthru
      _
    // Predicated region
    $region38: #{tpu_custom_call.1} parent=1 // pred_check
      _
    $region39: #{tpu_custom_call.1} parent=1 // pred_check_branch
      %1966 = sbr.rel (0) target = $region41
    $region40: #{tpu_custom_call.1} parent=1 // pred_region
      %1967 = dma.done [#allocation5], 512
    $region41: #{tpu_custom_call.1} parent=1 // pred_fallthru
      _
    %1968 = vsyncpa [#allocation4], 1
    %1969 = vsyncpa [#allocation7], 1
    %1970 = vsyncpa [#allocation5], 1

</llo_original>
